<compile_context>
chip_gen: v5e
topology: v5e:2x2
jax: 0.10.0
libtpu: 0.0.40
codegen_flags: <defaults>
</compile_context>

<pallas_src>
import functools

import jax
import jax.numpy as jnp
from jax.experimental import pallas as pl
from jax.experimental.pallas import tpu as pltpu

# True feature dims: 403 -> 300 -> 200 -> 100 -> 50 -> 25 -> 12 -> 1
DIMS = [403, 300, 200, 100, 50, 25, 12, 1]
BN_EPS = 1e-5
K_PAD = 512            # layer-1 K zero-padded to a lane multiple (carried in bf16)
MAX_TILE_B = 2048      # batch-tile cap: ~13 MiB working set, fits v7x 64 MiB VMEM easily


def _pad128(n):
    return ((n + 127) // 128) * 128


def _round_up(n, m):
    return ((n + m - 1) // m) * m


def _default_tile_b(B):
    """Large tiles (amortize ~0.35 us/grid-step), >=2 tiles whenever B > 16 so the
    "parallel" batch axis shards across v7x's 2 TensorCores, and multiples of 128
    (or 16 for small B) so the bf16 MXU LHS tiles cleanly."""
    if B <= 16:
        return _round_up(B, 8)
    n_tiles = max(2, -(-B // MAX_TILE_B))
    tile = -(-B // n_tiles)
    return _round_up(tile, 128) if tile >= 128 else _round_up(tile, 16)


def adnetwork_kernel(x_ref,
                     w1, b1, w2, b2, w3, b3, w4, b4, w5, b5, w6, b6,
                     w7t, b7, o_ref):
    """One batch tile of the whole MLP (all params VMEM-resident across the grid).

    x_ref : (TILE_B, 512) bf16       input tile (batch on sublanes, zero-padded features on lanes)
    w_i   : (in_pad, out_pad) bf16   BN-folded, zero-padded Linear weights
    b_i   : (1, out_pad) f32         BN-folded, zero-padded Linear biases
    w7t   : (8, 128) bf16            final Linear weight, transposed into row 0
    b7    : (1, 1) f32 in SMEM       final Linear bias scalar
    o_ref : (1, 1, TILE_B) f32       sigmoid outputs, lane-dense
    """
    ws = (w1, w2, w3, w4, w5, w6)
    bs = (b1, b2, b3, b4, b5, b6)

    h = x_ref[...]  # (TILE_B, 512) bf16 — fed straight to the MXU, no wrapper-side f32

    # Layers 1-3: (Linear+BN folded) -> ReLU ; layers 4-6: -> ReLU6.
    # Dropout = identity in eval mode.  f32 MXU accumulation; ReLU/clip in f32
    # (v5e has no bf16 VALU), then the inter-layer activation is stored bf16.
    for i in range(6):
        h = jnp.dot(h, ws[i][...], preferred_element_type=jnp.float32) + bs[i][...]
        h = jnp.maximum(h, 0.0) if i < 3 else jnp.clip(h, 0.0, 6.0)
        h = h.astype(jnp.bfloat16)

    # Final Linear(12,1) + Sigmoid: transpose-free contraction of the lane dims of
    # w7t (8,128) and h (TILE_B,128) -> (8, TILE_B).  The TILE_B scalar outputs land
    # lane-dense in row 0 (minimal HBM writeback, no materialized h.T on the XLU).
    logits8 = jax.lax.dot_general(w7t[...], h, (((1,), (1,)), ((), ())),
                                  preferred_element_type=jnp.float32)  # (8, TILE_B)
    logits = logits8[0:1, :] + b7[0, 0]
    o_ref[0] = jax.nn.sigmoid(logits)


def init_params(key):
    """PyTorch-style init: Linear U(-1/sqrt(fan_in), 1/sqrt(fan_in)); BN at defaults."""
    raw = []
    for i in range(7):
        fan_in, fan_out = DIMS[i], DIMS[i + 1]
        key, wk, bk = jax.random.split(key, 3)
        bound = 1.0 / float(fan_in) ** 0.5
        w = jax.random.uniform(wk, (fan_in, fan_out), jnp.float32, -bound, bound)
        b = jax.random.uniform(bk, (fan_out,), jnp.float32, -bound, bound)
        raw.append((w, b))
    # 6 BatchNorm1d(1) layers: [gamma=1, beta=0, running_mean=0, running_var=1]
    bn = jnp.tile(jnp.array([1.0, 0.0, 0.0, 1.0], jnp.float32), (6, 1))
    return raw, bn
    # TODO(synk): training-mode Dropout masking and batch-statistics BN are not
    # reproduced here (eval-mode forward only).


def prepare_params(raw, bn):
    """Fold eval-mode BN into the Linear params, zero-pad to lane multiples, cast bf16."""
    kparams = []
    for i in range(6):
        w, b = raw[i]
        gamma, beta, mean, var = bn[i]
        scale = gamma * jax.lax.rsqrt(var + BN_EPS)
        wf = w * scale
        bf = (b - mean) * scale + beta
        in_pad = K_PAD if i == 0 else _pad128(DIMS[i])   # layer-1 K padded like x
        out_pad = _pad128(DIMS[i + 1])
        wp = (jnp.zeros((in_pad, out_pad), jnp.float32)
              .at[:DIMS[i], :DIMS[i + 1]].set(wf)).astype(jnp.bfloat16)
        bp = jnp.zeros((1, out_pad), jnp.float32).at[0, :DIMS[i + 1]].set(bf)
        kparams += [wp, bp]
    w7, b7 = raw[6]
    w7t = (jnp.zeros((8, _pad128(DIMS[6])), jnp.float32)
           .at[0, :DIMS[6]].set(w7[:, 0])).astype(jnp.bfloat16)
    b7s = jnp.reshape(b7, (1, 1)).astype(jnp.float32)
    kparams += [w7t, b7s]
    return kparams


@functools.partial(jax.jit, static_argnames=("tile_b",))
def adnetwork_forward(x, kparams, tile_b=None):
    """x: (B, 1, 403) -> (B, 1, 1), eval-mode forward of ADNetwork.

    The cast-to-bf16 + lane/tail zero-pad below is a single fused XLA pass.  In
    production the upstream producer should emit x directly as bf16 (B_pad, 512)
    so the kernel's input DMA is the only HBM traffic for x.
    """
    B = x.shape[0]
    if tile_b is None:
        tile_b = _default_tile_b(B)
    B_pad = _round_up(B, tile_b)
    tiles = B_pad // tile_b

    x2 = jnp.pad(x.reshape(B, DIMS[0]).astype(jnp.bfloat16),
                 ((0, B_pad - B), (0, K_PAD - DIMS[0])))

    # x / out tiles move per grid step (auto double-buffered); weights & biases use
    # constant index_maps so they stay VMEM-resident across the whole grid.
    # (Single-buffering the invariant weights via pipeline_mode would save <1 MiB
    #  more VMEM; unnecessary at this working-set size, so kept on the default path.)
    in_specs = [pl.BlockSpec((tile_b, K_PAD), lambda i: (i, 0))]
    for p in kparams[:-1]:
        in_specs.append(pl.BlockSpec(p.shape, lambda i, nd=p.ndim: (0,) * nd))
    in_specs.append(pl.BlockSpec((1, 1), lambda i: (0, 0),
                                 memory_space=pltpu.MemorySpace.SMEM))

    out = pl.pallas_call(
        adnetwork_kernel,
        out_shape=jax.ShapeDtypeStruct((tiles, 1, tile_b), jnp.float32),
        grid=(tiles,),
        in_specs=in_specs,
        out_specs=pl.BlockSpec((1, 1, tile_b), lambda i: (i, 0, 0)),
        compiler_params=pltpu.CompilerParams(
            dimension_semantics=("parallel",),
            vmem_limit_bytes=48 * 1024 * 1024),
    )(x2, *kparams)

    return out.reshape(B_pad)[:B].reshape(B, 1, 1)


def reference_forward_f32(x, raw, bn):
    """Faithful eval-mode PyTorch semantics in pure f32 (unfolded BN)."""
    B = x.shape[0]
    h = x.reshape(B, DIMS[0]).astype(jnp.float32)
    for i in range(7):
        w, b = raw[i]
        h = h @ w + b
        if i < 6:
            g, be, m, v = bn[i]
            h = (h - m) * (g * jax.lax.rsqrt(v + BN_EPS)) + be
            h = jnp.maximum(h, 0.0) if i < 3 else jnp.clip(h, 0.0, 6.0)
    return jax.nn.sigmoid(h).reshape(B, 1, 1)


def reference_forward_matched(x, kparams):
    """Pure-JAX replica of the kernel numerics (folded bf16 params, bf16 input &
    activations, f32 accumulation, transpose-free final contraction)."""
    B = x.shape[0]
    h = jnp.pad(x.reshape(B, DIMS[0]).astype(jnp.bfloat16),
                ((0, 0), (0, K_PAD - DIMS[0])))
    for i in range(6):
        w, b = kparams[2 * i], kparams[2 * i + 1]
        h = jnp.dot(h, w, preferred_element_type=jnp.float32) + b
        h = jnp.maximum(h, 0.0) if i < 3 else jnp.clip(h, 0.0, 6.0)
        h = h.astype(jnp.bfloat16)
    w7t, b7 = kparams[12], kparams[13]
    logits = jax.lax.dot_general(w7t, h, (((1,), (1,)), ((), ())),
                                 preferred_element_type=jnp.float32)[0:1, :] + b7[0, 0]
    return jax.nn.sigmoid(logits).reshape(B, 1, 1)


if __name__ == "__main__":
    key = jax.random.PRNGKey(0)
    pkey, xkey, xkey2 = jax.random.split(key, 3)

    raw, bn = init_params(pkey)
    kparams = prepare_params(raw, bn)

    # Small single-tile run (matches the module's (N, 1, 403) input layout).
    B = 8
    x = jax.random.normal(xkey, (B, 1, 403), jnp.float32)
    out = adnetwork_forward(x, kparams)
    jax.block_until_ready(out)
    assert out.shape == (B, 1, 1)
    assert jnp.allclose(out, reference_forward_matched(x, kparams), atol=2e-3, rtol=2e-3)
    assert jnp.allclose(out, reference_forward_f32(x, raw, bn), atol=5e-2)

    # Small multi-tile run exercising the parallel batch grid + ragged tail padding.
    B2 = 20
    x2 = jax.random.normal(xkey2, (B2, 1, 403), jnp.float32)
    out2 = adnetwork_forward(x2, kparams, tile_b=16)   # grid=(2,), last tile zero-padded
    jax.block_until_ready(out2)
    assert out2.shape == (B2, 1, 1)
    assert jnp.allclose(out2, reference_forward_matched(x2, kparams), atol=2e-3, rtol=2e-3)
    assert jnp.allclose(out2, reference_forward_f32(x2, raw, bn), atol=5e-2)

    print("KERNEL_OK")
</pallas_src>

<mosaic_0001>
module attributes {stable_mosaic.version = 11 : i64} {
  func.func @adnetwork_kernel(%arg0: i32, %arg1: memref<8x512xbf16, #tpu.memory_space<vmem>>, %arg2: memref<512x384xbf16, #tpu.memory_space<vmem>>, %arg3: memref<1x384xf32, #tpu.memory_space<vmem>>, %arg4: memref<384x256xbf16, #tpu.memory_space<vmem>>, %arg5: memref<1x256xf32, #tpu.memory_space<vmem>>, %arg6: memref<256x128xbf16, #tpu.memory_space<vmem>>, %arg7: memref<1x128xf32, #tpu.memory_space<vmem>>, %arg8: memref<128x128xbf16, #tpu.memory_space<vmem>>, %arg9: memref<1x128xf32, #tpu.memory_space<vmem>>, %arg10: memref<128x128xbf16, #tpu.memory_space<vmem>>, %arg11: memref<1x128xf32, #tpu.memory_space<vmem>>, %arg12: memref<128x128xbf16, #tpu.memory_space<vmem>>, %arg13: memref<1x128xf32, #tpu.memory_space<vmem>>, %arg14: memref<8x128xbf16, #tpu.memory_space<vmem>>, %arg15: memref<1x1xf32, #tpu.memory_space<smem>>, %arg16: memref<1x1x8xf32, #tpu.memory_space<vmem>>) attributes {dimension_semantics = [#tpu.dimension_semantics<parallel>], iteration_bounds = array<i64: 1>, scalar_prefetch = 0 : i64, scratch_operands = 0 : i64, tpu.core_type = #tpu.core_type<tc>, window_params = [{transform_indices = @transform_0, window_bounds = array<i64: 8, 512>}, {pipeline_mode = #tpu.pipeline_mode<synchronous>, transform_indices = @transform_1, window_bounds = array<i64: 512, 384>}, {pipeline_mode = #tpu.pipeline_mode<synchronous>, transform_indices = @transform_2, window_bounds = array<i64: 1, 384>}, {pipeline_mode = #tpu.pipeline_mode<synchronous>, transform_indices = @transform_3, window_bounds = array<i64: 384, 256>}, {pipeline_mode = #tpu.pipeline_mode<synchronous>, transform_indices = @transform_4, window_bounds = array<i64: 1, 256>}, {pipeline_mode = #tpu.pipeline_mode<synchronous>, transform_indices = @transform_5, window_bounds = array<i64: 256, 128>}, {pipeline_mode = #tpu.pipeline_mode<synchronous>, transform_indices = @transform_6, window_bounds = array<i64: 1, 128>}, {pipeline_mode = #tpu.pipeline_mode<synchronous>, transform_indices = @transform_7, window_bounds = array<i64: 128, 128>}, {pipeline_mode = #tpu.pipeline_mode<synchronous>, transform_indices = @transform_8, window_bounds = array<i64: 1, 128>}, {pipeline_mode = #tpu.pipeline_mode<synchronous>, transform_indices = @transform_9, window_bounds = array<i64: 128, 128>}, {pipeline_mode = #tpu.pipeline_mode<synchronous>, transform_indices = @transform_10, window_bounds = array<i64: 1, 128>}, {pipeline_mode = #tpu.pipeline_mode<synchronous>, transform_indices = @transform_11, window_bounds = array<i64: 128, 128>}, {pipeline_mode = #tpu.pipeline_mode<synchronous>, transform_indices = @transform_12, window_bounds = array<i64: 1, 128>}, {pipeline_mode = #tpu.pipeline_mode<synchronous>, transform_indices = @transform_13, window_bounds = array<i64: 8, 128>}, {transform_indices = @transform_14, window_bounds = array<i64: 1, 1>}, {transform_indices = @transform_15, window_bounds = array<i64: 1, 1, 8>}]} {
    %c0 = arith.constant 0 : index
    %c0_0 = arith.constant 0 : index
    %0 = vector.load %arg1[%c0, %c0_0] : memref<8x512xbf16, #tpu.memory_space<vmem>>, vector<8x512xbf16>
    %c0_1 = arith.constant 0 : index
    %c0_2 = arith.constant 0 : index
    %1 = vector.load %arg2[%c0_1, %c0_2] : memref<512x384xbf16, #tpu.memory_space<vmem>>, vector<512x384xbf16>
    %cst = arith.constant dense<0.000000e+00> : vector<8x384xf32>
    %2 = tpu.matmul %0, %1, %cst {dimension_numbers = #tpu.dot_dimension_numbers<[1], [0], [0], [1], [0, 0, 1, 1], [], []>} : vector<8x512xbf16>, vector<512x384xbf16>, vector<8x384xf32> -> vector<8x384xf32>
    %c0_3 = arith.constant 0 : index
    %c0_4 = arith.constant 0 : index
    %3 = vector.load %arg3[%c0_3, %c0_4] : memref<1x384xf32, #tpu.memory_space<vmem>>, vector<1x384xf32>
    %4 = vector.broadcast %3 : vector<1x384xf32> to vector<8x384xf32>
    %5 = arith.addf %2, %4 : vector<8x384xf32>
    %cst_5 = arith.constant 0.000000e+00 : f32
    %6 = vector.broadcast %cst_5 : f32 to vector<8x384xf32>
    %7 = arith.maximumf %5, %6 : vector<8x384xf32>
    %8 = arith.truncf %7 : vector<8x384xf32> to vector<8x384xbf16>
    %c0_6 = arith.constant 0 : index
    %c0_7 = arith.constant 0 : index
    %9 = vector.load %arg4[%c0_6, %c0_7] : memref<384x256xbf16, #tpu.memory_space<vmem>>, vector<384x256xbf16>
    %cst_8 = arith.constant dense<0.000000e+00> : vector<8x256xf32>
    %10 = tpu.matmul %8, %9, %cst_8 {dimension_numbers = #tpu.dot_dimension_numbers<[1], [0], [0], [1], [0, 0, 1, 1], [], []>} : vector<8x384xbf16>, vector<384x256xbf16>, vector<8x256xf32> -> vector<8x256xf32>
    %c0_9 = arith.constant 0 : index
    %c0_10 = arith.constant 0 : index
    %11 = vector.load %arg5[%c0_9, %c0_10] : memref<1x256xf32, #tpu.memory_space<vmem>>, vector<1x256xf32>
    %12 = vector.broadcast %11 : vector<1x256xf32> to vector<8x256xf32>
    %13 = arith.addf %10, %12 : vector<8x256xf32>
    %cst_11 = arith.constant 0.000000e+00 : f32
    %14 = vector.broadcast %cst_11 : f32 to vector<8x256xf32>
    %15 = arith.maximumf %13, %14 : vector<8x256xf32>
    %16 = arith.truncf %15 : vector<8x256xf32> to vector<8x256xbf16>
    %c0_12 = arith.constant 0 : index
    %c0_13 = arith.constant 0 : index
    %17 = vector.load %arg6[%c0_12, %c0_13] : memref<256x128xbf16, #tpu.memory_space<vmem>>, vector<256x128xbf16>
    %cst_14 = arith.constant dense<0.000000e+00> : vector<8x128xf32>
    %18 = tpu.matmul %16, %17, %cst_14 {dimension_numbers = #tpu.dot_dimension_numbers<[1], [0], [0], [1], [0, 0, 1, 1], [], []>} : vector<8x256xbf16>, vector<256x128xbf16>, vector<8x128xf32> -> vector<8x128xf32>
    %c0_15 = arith.constant 0 : index
    %c0_16 = arith.constant 0 : index
    %19 = vector.load %arg7[%c0_15, %c0_16] : memref<1x128xf32, #tpu.memory_space<vmem>>, vector<1x128xf32>
    %20 = vector.broadcast %19 : vector<1x128xf32> to vector<8x128xf32>
    %21 = arith.addf %18, %20 : vector<8x128xf32>
    %cst_17 = arith.constant 0.000000e+00 : f32
    %22 = vector.broadcast %cst_17 : f32 to vector<8x128xf32>
    %23 = arith.maximumf %21, %22 : vector<8x128xf32>
    %24 = arith.truncf %23 : vector<8x128xf32> to vector<8x128xbf16>
    %c0_18 = arith.constant 0 : index
    %c0_19 = arith.constant 0 : index
    %25 = vector.load %arg8[%c0_18, %c0_19] : memref<128x128xbf16, #tpu.memory_space<vmem>>, vector<128x128xbf16>
    %cst_20 = arith.constant dense<0.000000e+00> : vector<8x128xf32>
    %26 = tpu.matmul %24, %25, %cst_20 {dimension_numbers = #tpu.dot_dimension_numbers<[1], [0], [0], [1], [0, 0, 1, 1], [], []>} : vector<8x128xbf16>, vector<128x128xbf16>, vector<8x128xf32> -> vector<8x128xf32>
    %c0_21 = arith.constant 0 : index
    %c0_22 = arith.constant 0 : index
    %27 = vector.load %arg9[%c0_21, %c0_22] : memref<1x128xf32, #tpu.memory_space<vmem>>, vector<1x128xf32>
    %28 = vector.broadcast %27 : vector<1x128xf32> to vector<8x128xf32>
    %29 = arith.addf %26, %28 : vector<8x128xf32>
    %cst_23 = arith.constant 0.000000e+00 : f32
    %cst_24 = arith.constant 6.000000e+00 : f32
    %30 = vector.broadcast %cst_23 : f32 to vector<8x128xf32>
    %31 = arith.maximumf %30, %29 : vector<8x128xf32>
    %32 = vector.broadcast %cst_24 : f32 to vector<8x128xf32>
    %33 = arith.minimumf %32, %31 : vector<8x128xf32>
    %34 = arith.truncf %33 : vector<8x128xf32> to vector<8x128xbf16>
    %c0_25 = arith.constant 0 : index
    %c0_26 = arith.constant 0 : index
    %35 = vector.load %arg10[%c0_25, %c0_26] : memref<128x128xbf16, #tpu.memory_space<vmem>>, vector<128x128xbf16>
    %cst_27 = arith.constant dense<0.000000e+00> : vector<8x128xf32>
    %36 = tpu.matmul %34, %35, %cst_27 {dimension_numbers = #tpu.dot_dimension_numbers<[1], [0], [0], [1], [0, 0, 1, 1], [], []>} : vector<8x128xbf16>, vector<128x128xbf16>, vector<8x128xf32> -> vector<8x128xf32>
    %c0_28 = arith.constant 0 : index
    %c0_29 = arith.constant 0 : index
    %37 = vector.load %arg11[%c0_28, %c0_29] : memref<1x128xf32, #tpu.memory_space<vmem>>, vector<1x128xf32>
    %38 = vector.broadcast %37 : vector<1x128xf32> to vector<8x128xf32>
    %39 = arith.addf %36, %38 : vector<8x128xf32>
    %cst_30 = arith.constant 0.000000e+00 : f32
    %cst_31 = arith.constant 6.000000e+00 : f32
    %40 = vector.broadcast %cst_30 : f32 to vector<8x128xf32>
    %41 = arith.maximumf %40, %39 : vector<8x128xf32>
    %42 = vector.broadcast %cst_31 : f32 to vector<8x128xf32>
    %43 = arith.minimumf %42, %41 : vector<8x128xf32>
    %44 = arith.truncf %43 : vector<8x128xf32> to vector<8x128xbf16>
    %c0_32 = arith.constant 0 : index
    %c0_33 = arith.constant 0 : index
    %45 = vector.load %arg12[%c0_32, %c0_33] : memref<128x128xbf16, #tpu.memory_space<vmem>>, vector<128x128xbf16>
    %cst_34 = arith.constant dense<0.000000e+00> : vector<8x128xf32>
    %46 = tpu.matmul %44, %45, %cst_34 {dimension_numbers = #tpu.dot_dimension_numbers<[1], [0], [0], [1], [0, 0, 1, 1], [], []>} : vector<8x128xbf16>, vector<128x128xbf16>, vector<8x128xf32> -> vector<8x128xf32>
    %c0_35 = arith.constant 0 : index
    %c0_36 = arith.constant 0 : index
    %47 = vector.load %arg13[%c0_35, %c0_36] : memref<1x128xf32, #tpu.memory_space<vmem>>, vector<1x128xf32>
    %48 = vector.broadcast %47 : vector<1x128xf32> to vector<8x128xf32>
    %49 = arith.addf %46, %48 : vector<8x128xf32>
    %cst_37 = arith.constant 0.000000e+00 : f32
    %cst_38 = arith.constant 6.000000e+00 : f32
    %50 = vector.broadcast %cst_37 : f32 to vector<8x128xf32>
    %51 = arith.maximumf %50, %49 : vector<8x128xf32>
    %52 = vector.broadcast %cst_38 : f32 to vector<8x128xf32>
    %53 = arith.minimumf %52, %51 : vector<8x128xf32>
    %54 = arith.truncf %53 : vector<8x128xf32> to vector<8x128xbf16>
    %c0_39 = arith.constant 0 : index
    %c0_40 = arith.constant 0 : index
    %55 = vector.load %arg14[%c0_39, %c0_40] : memref<8x128xbf16, #tpu.memory_space<vmem>>, vector<8x128xbf16>
    %cst_41 = arith.constant dense<0.000000e+00> : vector<8x8xf32>
    %56 = tpu.matmul %55, %54, %cst_41 {dimension_numbers = #tpu.dot_dimension_numbers<[1], [1], [0], [0], [0, 0, 1, 0], [], []>} : vector<8x128xbf16>, vector<8x128xbf16>, vector<8x8xf32> -> vector<8x8xf32>
    %57 = vector.extract_strided_slice %56 {offsets = [0, 0], sizes = [1, 8], strides = [1, 1]} : vector<8x8xf32> to vector<1x8xf32>
    %c0_42 = arith.constant 0 : index
    %c0_43 = arith.constant 0 : index
    %58 = memref.load %arg15[%c0_42, %c0_43] : memref<1x1xf32, #tpu.memory_space<smem>>
    %59 = vector.broadcast %58 : f32 to vector<1x8xf32>
    %60 = arith.addf %57, %59 : vector<1x8xf32>
    %61 = arith.negf %60 : vector<1x8xf32>
    %62 = math.exp %61 : vector<1x8xf32>
    %cst_44 = arith.constant 1.000000e+00 : f32
    %63 = vector.broadcast %cst_44 : f32 to vector<1x8xf32>
    %64 = arith.addf %63, %62 : vector<1x8xf32>
    %65 = arith.divf %63, %64 : vector<1x8xf32>
    %c0_45 = arith.constant 0 : index
    %c0_46 = arith.constant 0 : index
    %c0_47 = arith.constant 0 : index
    %66 = vector.load %arg16[%c0_45, %c0_46, %c0_47] : memref<1x1x8xf32, #tpu.memory_space<vmem>>, vector<1x1x8xf32>
    %67 = vector.shape_cast %66 : vector<1x1x8xf32> to vector<1x8xf32>
    %68 = vector.shape_cast %65 : vector<1x8xf32> to vector<1x1x8xf32>
    tpu.vector_store %arg16[%c0_45, %c0_46, %c0_47], %68 {strides = array<i32>} : memref<1x1x8xf32, #tpu.memory_space<vmem>>, vector<1x1x8xf32>,
    return
  }
  func.func @transform_0(%arg0: i32) -> (i32, i32) {
    %c0_i32 = arith.constant 0 : i32
    %c0_i32_0 = arith.constant 0 : i32
    return %arg0, %c0_i32 : i32, i32
  }
  func.func @transform_1(%arg0: i32) -> (i32, i32) {
    %c0_i32 = arith.constant 0 : i32
    %c0_i32_0 = arith.constant 0 : i32
    %c0_i32_1 = arith.constant 0 : i32
    return %c0_i32, %c0_i32_0 : i32, i32
  }
  func.func @transform_2(%arg0: i32) -> (i32, i32) {
    %c0_i32 = arith.constant 0 : i32
    %c0_i32_0 = arith.constant 0 : i32
    %c0_i32_1 = arith.constant 0 : i32
    return %c0_i32, %c0_i32_0 : i32, i32
  }
  func.func @transform_3(%arg0: i32) -> (i32, i32) {
    %c0_i32 = arith.constant 0 : i32
    %c0_i32_0 = arith.constant 0 : i32
    %c0_i32_1 = arith.constant 0 : i32
    return %c0_i32, %c0_i32_0 : i32, i32
  }
  func.func @transform_4(%arg0: i32) -> (i32, i32) {
    %c0_i32 = arith.constant 0 : i32
    %c0_i32_0 = arith.constant 0 : i32
    %c0_i32_1 = arith.constant 0 : i32
    return %c0_i32, %c0_i32_0 : i32, i32
  }
  func.func @transform_5(%arg0: i32) -> (i32, i32) {
    %c0_i32 = arith.constant 0 : i32
    %c0_i32_0 = arith.constant 0 : i32
    %c0_i32_1 = arith.constant 0 : i32
    return %c0_i32, %c0_i32_0 : i32, i32
  }
  func.func @transform_6(%arg0: i32) -> (i32, i32) {
    %c0_i32 = arith.constant 0 : i32
    %c0_i32_0 = arith.constant 0 : i32
    %c0_i32_1 = arith.constant 0 : i32
    return %c0_i32, %c0_i32_0 : i32, i32
  }
  func.func @transform_7(%arg0: i32) -> (i32, i32) {
    %c0_i32 = arith.constant 0 : i32
    %c0_i32_0 = arith.constant 0 : i32
    %c0_i32_1 = arith.constant 0 : i32
    return %c0_i32, %c0_i32_0 : i32, i32
  }
  func.func @transform_8(%arg0: i32) -> (i32, i32) {
    %c0_i32 = arith.constant 0 : i32
    %c0_i32_0 = arith.constant 0 : i32
    %c0_i32_1 = arith.constant 0 : i32
    return %c0_i32, %c0_i32_0 : i32, i32
  }
  func.func @transform_9(%arg0: i32) -> (i32, i32) {
    %c0_i32 = arith.constant 0 : i32
    %c0_i32_0 = arith.constant 0 : i32
    %c0_i32_1 = arith.constant 0 : i32
    return %c0_i32, %c0_i32_0 : i32, i32
  }
  func.func @transform_10(%arg0: i32) -> (i32, i32) {
    %c0_i32 = arith.constant 0 : i32
    %c0_i32_0 = arith.constant 0 : i32
    %c0_i32_1 = arith.constant 0 : i32
    return %c0_i32, %c0_i32_0 : i32, i32
  }
  func.func @transform_11(%arg0: i32) -> (i32, i32) {
    %c0_i32 = arith.constant 0 : i32
    %c0_i32_0 = arith.constant 0 : i32
    %c0_i32_1 = arith.constant 0 : i32
    return %c0_i32, %c0_i32_0 : i32, i32
  }
  func.func @transform_12(%arg0: i32) -> (i32, i32) {
    %c0_i32 = arith.constant 0 : i32
    %c0_i32_0 = arith.constant 0 : i32
    %c0_i32_1 = arith.constant 0 : i32
    return %c0_i32, %c0_i32_0 : i32, i32
  }
  func.func @transform_13(%arg0: i32) -> (i32, i32) {
    %c0_i32 = arith.constant 0 : i32
    %c0_i32_0 = arith.constant 0 : i32
    %c0_i32_1 = arith.constant 0 : i32
    return %c0_i32, %c0_i32_0 : i32, i32
  }
  func.func @transform_14(%arg0: i32) -> (i32, i32) {
    %c0_i32 = arith.constant 0 : i32
    %c0_i32_0 = arith.constant 0 : i32
    %c0_i32_1 = arith.constant 0 : i32
    return %c0_i32, %c0_i32_0 : i32, i32
  }
  func.func @transform_15(%arg0: i32) -> (i32, i32, i32) {
    %c0_i32 = arith.constant 0 : i32
    %c0_i32_0 = arith.constant 0 : i32
    %c0_i32_1 = arith.constant 0 : i32
    return %arg0, %c0_i32, %c0_i32_0 : i32, i32, i32
  }
}

</mosaic_0001>

<llo_original>
// kernel: adnetwork_forward.1
$region0: #{adnetwork_forward.1}
  #allocation0 [shape = 'u32[]', space=smem, size = 0x4, offset = 0x4, fixed_abs, tag = 'smem constant byte address 0x4 - core index']
  #allocation1 [shape = 'u32[72,128]{1,0:T(1,128)}', space=vmem, size = 0x9000, scoped, tag = 'internal scratch']
  #allocation2 [shape = 'f32[1,1]{1,0:T(1,128)S(6)}', space=smem, size = 0x200, scoped, tag = 'scoped memory for adnetwork_forward.1']
  %s0 = inlined_call_operand.vmem [shape: bf16[8,512], index: 0, kind: input, shape index: {}]
  %s1 = inlined_call_operand.hbm [shape: bf16[512,384], index: 1, kind: input, shape index: {}]
  %s2 = inlined_call_operand.vmem [shape: f32[1,384], index: 2, kind: input, shape index: {}]
  %s3 = inlined_call_operand.hbm [shape: bf16[384,256], index: 3, kind: input, shape index: {}]
  %s4 = inlined_call_operand.vmem [shape: f32[1,256], index: 4, kind: input, shape index: {}]
  %s5 = inlined_call_operand.hbm [shape: bf16[256,128], index: 5, kind: input, shape index: {}]
  %s6 = inlined_call_operand.vmem [shape: f32[1,128], index: 6, kind: input, shape index: {}]
  %s7 = inlined_call_operand.vmem [shape: bf16[128,128], index: 7, kind: input, shape index: {}]
  %s8 = inlined_call_operand.vmem [shape: f32[1,128], index: 8, kind: input, shape index: {}]
  %s9 = inlined_call_operand.hbm [shape: bf16[128,128], index: 9, kind: input, shape index: {}]
  %s10 = inlined_call_operand.vmem [shape: f32[1,128], index: 10, kind: input, shape index: {}]
  %s11 = inlined_call_operand.hbm [shape: bf16[128,128], index: 11, kind: input, shape index: {}]
  %s12 = inlined_call_operand.vmem [shape: f32[1,128], index: 12, kind: input, shape index: {}]
  %s13 = inlined_call_operand.vmem [shape: bf16[8,128], index: 13, kind: input, shape index: {}]
  %s14 = inlined_call_operand.<no memory space> [shape: f32[1,1], index: 14, kind: input, shape index: {}]
  %s15 = inlined_call_operand.hbm [shape: f32[1,1,8], index: 15, kind: output, shape index: {}]
  %s16 = sld [smem:[#allocation0]]
  $region90: #{adnetwork_forward.1} parent=0
    _
  %s18 = ssub.s32 1, %s16
  %s19 = scalar_select 0, %s18, %s16
  %20 = sst [smem:[#allocation2]] %s14
  $region1: #{adnetwork_forward.1} parent=0
    #allocation3 [shape = 'u8[393216]{0}', space=vmem, size = 0x60000, scoped, tag = 'input window, operand 1, single buffered']
    #allocation4 [shape = 's32[1]{0}', space=sflag, size = 0x4, scoped, tag = 'scoped memory for adnetwork_forward.1']
    #allocation5 [shape = 's32[1]{0}', space=sflag, size = 0x4, scoped, tag = 'scoped memory for adnetwork_forward.1']
    #allocation6 [shape = 'u8[196608]{0}', space=vmem, size = 0x30000, scoped, tag = 'input window, operand 3, single buffered']
    #allocation7 [shape = 's32[1]{0}', space=sflag, size = 0x4, scoped, tag = 'scoped memory for adnetwork_forward.1']
    #allocation8 [shape = 'u8[65536]{0}', space=vmem, size = 0x10000, scoped, tag = 'input window, operand 5, single buffered']
    #allocation9 [shape = 'u8[32768]{0}', space=vmem, size = 0x8000, scoped, tag = 'input window, operand 9, single buffered']
    #allocation10 [shape = 's32[1]{0}', space=sflag, size = 0x4, scoped, tag = 'scoped memory for adnetwork_forward.1']
    #allocation11 [shape = 'u8[32768]{0}', space=vmem, size = 0x8000, scoped, tag = 'input window, operand 11, single buffered']
    #allocation12 [shape = 'u8[512]{0}', space=vmem, size = 0x400, scoped, tag = 'output window, operand 0, single buffered']
    %21 = vsyncpa [#allocation4], 0
    %22 = vsyncpa [#allocation7], 0
    %23 = vsyncpa [#allocation10], 0
    %24 = vsyncpa [#allocation5], 0
    // Predicated region
    $region2: #{adnetwork_forward.1} parent=1 // pred_check
      _
    $region3: #{adnetwork_forward.1} parent=1 // pred_check_branch
      %26 = sbr.rel (0) target = $region5
    $region4: #{adnetwork_forward.1} parent=1 // pred_region
      _
    $region5: #{adnetwork_forward.1} parent=1 // pred_fallthru
      _
    // Predicated region
    $region6: #{adnetwork_forward.1} parent=1 // pred_check
      _
    $region7: #{adnetwork_forward.1} parent=1 // pred_check_branch
      %28 = sbr.rel (0) target = $region9
    $region8: #{adnetwork_forward.1} parent=1 // pred_region
      %30 = vsyncadd [#allocation4], 0
      %s31 = sshll.u32 %s1, 4
      %s32 = int_to_ptr.hbm [resolvable:$true] %s31
      %s33 = sshll.u32 [#allocation3], 4
      %s34 = int_to_ptr.vmem [resolvable:$true] %s33
      %39 = dma.hbm_to_vmem [thread:$0]  %s32, 12288, %s34, [#allocation4], 192, 192, 12
    $region9: #{adnetwork_forward.1} parent=1 // pred_fallthru
      _
    // Predicated region
    $region10: #{adnetwork_forward.1} parent=1 // pred_check
      _
    $region11: #{adnetwork_forward.1} parent=1 // pred_check_branch
      %41 = sbr.rel (0) target = $region13
    $region12: #{adnetwork_forward.1} parent=1 // pred_region
      _
    $region13: #{adnetwork_forward.1} parent=1 // pred_fallthru
      _
    // Predicated region
    $region14: #{adnetwork_forward.1} parent=1 // pred_check
      _
    $region15: #{adnetwork_forward.1} parent=1 // pred_check_branch
      %43 = sbr.rel (0) target = $region17
    $region16: #{adnetwork_forward.1} parent=1 // pred_region
      %45 = vsyncadd [#allocation7], 0
      %s46 = sshll.u32 %s3, 4
      %s47 = int_to_ptr.hbm [resolvable:$true] %s46
      %s48 = sshll.u32 [#allocation6], 4
      %s49 = int_to_ptr.vmem [resolvable:$true] %s48
      %54 = dma.hbm_to_vmem [thread:$0]  %s47, 6144, %s49, [#allocation7], 128, 128, 8
    $region17: #{adnetwork_forward.1} parent=1 // pred_fallthru
      _
    // Predicated region
    $region18: #{adnetwork_forward.1} parent=1 // pred_check
      _
    $region19: #{adnetwork_forward.1} parent=1 // pred_check_branch
      %56 = sbr.rel (0) target = $region21
    $region20: #{adnetwork_forward.1} parent=1 // pred_region
      _
    $region21: #{adnetwork_forward.1} parent=1 // pred_fallthru
      _
    // Predicated region
    $region22: #{adnetwork_forward.1} parent=1 // pred_check
      _
    $region23: #{adnetwork_forward.1} parent=1 // pred_check_branch
      %58 = sbr.rel (0) target = $region25
    $region24: #{adnetwork_forward.1} parent=1 // pred_region
      %60 = vsyncadd [#allocation7], 0
      %s61 = sshll.u32 %s5, 4
      %s62 = int_to_ptr.hbm [resolvable:$true] %s61
      %s63 = sshll.u32 [#allocation8], 4
      %s64 = int_to_ptr.vmem [resolvable:$true] %s63
      %69 = dma.hbm_to_vmem [thread:$0]  %s62, 2048, %s64, [#allocation7], 64, 64, 4
    $region25: #{adnetwork_forward.1} parent=1 // pred_fallthru
      _
    // Predicated region
    $region26: #{adnetwork_forward.1} parent=1 // pred_check
      _
    $region27: #{adnetwork_forward.1} parent=1 // pred_check_branch
      %71 = sbr.rel (0) target = $region29
    $region28: #{adnetwork_forward.1} parent=1 // pred_region
      _
    $region29: #{adnetwork_forward.1} parent=1 // pred_fallthru
      _
    // Predicated region
    $region30: #{adnetwork_forward.1} parent=1 // pred_check
      _
    $region31: #{adnetwork_forward.1} parent=1 // pred_check_branch
      %73 = sbr.rel (0) target = $region33
    $region32: #{adnetwork_forward.1} parent=1 // pred_region
      _
    $region33: #{adnetwork_forward.1} parent=1 // pred_fallthru
      _
    // Predicated region
    $region34: #{adnetwork_forward.1} parent=1 // pred_check
      _
    $region35: #{adnetwork_forward.1} parent=1 // pred_check_branch
      %75 = sbr.rel (0) target = $region37
    $region36: #{adnetwork_forward.1} parent=1 // pred_region
      _
    $region37: #{adnetwork_forward.1} parent=1 // pred_fallthru
      _
    // Predicated region
    $region38: #{adnetwork_forward.1} parent=1 // pred_check
      _
    $region39: #{adnetwork_forward.1} parent=1 // pred_check_branch
      %77 = sbr.rel (0) target = $region41
    $region40: #{adnetwork_forward.1} parent=1 // pred_region
      %79 = vsyncadd [#allocation10], 0
      %s80 = sshll.u32 %s9, 4
      %s81 = int_to_ptr.hbm [resolvable:$true] %s80
      %s82 = sshll.u32 [#allocation9], 4
      %s83 = int_to_ptr.vmem [resolvable:$true] %s82
      %88 = dma.hbm_to_vmem [thread:$0]  %s81, 1024, %s83, [#allocation10], 64, 64, 4
    $region41: #{adnetwork_forward.1} parent=1 // pred_fallthru
      _
    // Predicated region
    $region42: #{adnetwork_forward.1} parent=1 // pred_check
      _
    $region43: #{adnetwork_forward.1} parent=1 // pred_check_branch
      %90 = sbr.rel (0) target = $region45
    $region44: #{adnetwork_forward.1} parent=1 // pred_region
      _
    $region45: #{adnetwork_forward.1} parent=1 // pred_fallthru
      _
    // Predicated region
    $region46: #{adnetwork_forward.1} parent=1 // pred_check
      _
    $region47: #{adnetwork_forward.1} parent=1 // pred_check_branch
      %92 = sbr.rel (0) target = $region49
    $region48: #{adnetwork_forward.1} parent=1 // pred_region
      %94 = vsyncadd [#allocation10], 0
      %s95 = sshll.u32 %s11, 4
      %s96 = int_to_ptr.hbm [resolvable:$true] %s95
      %s97 = sshll.u32 [#allocation11], 4
      %s98 = int_to_ptr.vmem [resolvable:$true] %s97
      %103 = dma.hbm_to_vmem [thread:$0]  %s96, 1024, %s98, [#allocation10], 64, 64, 4
    $region49: #{adnetwork_forward.1} parent=1 // pred_fallthru
      _
    // Predicated region
    $region50: #{adnetwork_forward.1} parent=1 // pred_check
      _
    $region51: #{adnetwork_forward.1} parent=1 // pred_check_branch
      %105 = sbr.rel (0) target = $region53
    $region52: #{adnetwork_forward.1} parent=1 // pred_region
      _
    $region53: #{adnetwork_forward.1} parent=1 // pred_fallthru
      _
    // Predicated region
    $region54: #{adnetwork_forward.1} parent=1 // pred_check
      _
    $region55: #{adnetwork_forward.1} parent=1 // pred_check_branch
      %107 = sbr.rel (0) target = $region57
    $region56: #{adnetwork_forward.1} parent=1 // pred_region
      _
    $region57: #{adnetwork_forward.1} parent=1 // pred_fallthru
      _
    // Predicated region
    $region58: #{adnetwork_forward.1} parent=1 // pred_check
      _
    $region59: #{adnetwork_forward.1} parent=1 // pred_check_branch
      %109 = sbr.rel (0) target = $region61
    $region60: #{adnetwork_forward.1} parent=1 // pred_region
      _
    $region61: #{adnetwork_forward.1} parent=1 // pred_fallthru
      _
    // Predicated region
    $region62: #{adnetwork_forward.1} parent=1 // pred_check
      _
    $region63: #{adnetwork_forward.1} parent=1 // pred_check_branch
      %111 = sbr.rel (0) target = $region65
    $region64: #{adnetwork_forward.1} parent=1 // pred_region
      %113 = dma.done [#allocation4], 12288
    $region65: #{adnetwork_forward.1} parent=1 // pred_fallthru
      _
    // Predicated region
    $region66: #{adnetwork_forward.1} parent=1 // pred_check
      _
    $region67: #{adnetwork_forward.1} parent=1 // pred_check_branch
      %115 = sbr.rel (0) target = $region69
    $region68: #{adnetwork_forward.1} parent=1 // pred_region
      %117 = dma.done [#allocation7], 6144
    $region69: #{adnetwork_forward.1} parent=1 // pred_fallthru
      _
    // Predicated region
    $region70: #{adnetwork_forward.1} parent=1 // pred_check
      _
    $region71: #{adnetwork_forward.1} parent=1 // pred_check_branch
      %119 = sbr.rel (0) target = $region73
    $region72: #{adnetwork_forward.1} parent=1 // pred_region
      %121 = dma.done [#allocation7], 2048
    $region73: #{adnetwork_forward.1} parent=1 // pred_fallthru
      _
    // Predicated region
    $region74: #{adnetwork_forward.1} parent=1 // pred_check
      _
    $region75: #{adnetwork_forward.1} parent=1 // pred_check_branch
      %123 = sbr.rel (0) target = $region77
    $region76: #{adnetwork_forward.1} parent=1 // pred_region
      %125 = dma.done [#allocation10], 1024
    $region77: #{adnetwork_forward.1} parent=1 // pred_fallthru
      _
    // Predicated region
    $region78: #{adnetwork_forward.1} parent=1 // pred_check
      _
    $region79: #{adnetwork_forward.1} parent=1 // pred_check_branch
      %127 = sbr.rel (0) target = $region81
    $region80: #{adnetwork_forward.1} parent=1 // pred_region
      %129 = dma.done [#allocation10], 1024
    $region81: #{adnetwork_forward.1} parent=1 // pred_fallthru
      _
    %v131 = vld [vmem:[%s0] sm:$0xff]
    %v132 = vld [vmem:[%s0 + $0x8] sm:$0xff]
    %v133 = vld [vmem:[#allocation3] sm:$0xff]
    %v134 = vld [vmem:[#allocation3 + $0x8] sm:$0xf]
    %v135 = vld [vmem:[#allocation3 + $0xc] sm:$0xff]
    %v136 = vld [vmem:[#allocation3 + $0x14] sm:$0xf]
    %v137 = vld [vmem:[#allocation3 + $0x18] sm:$0xff]
    %v138 = vld [vmem:[#allocation3 + $0x20] sm:$0xf]
    %v139 = vld [vmem:[#allocation3 + $0x24] sm:$0xff]
    %v140 = vld [vmem:[#allocation3 + $0x2c] sm:$0xf]
    %v141 = vld [vmem:[#allocation3 + $0x30] sm:$0xff]
    %v142 = vld [vmem:[#allocation3 + $0x38] sm:$0xf]
    %v143 = vld [vmem:[#allocation3 + $0x3c] sm:$0xff]
    %v144 = vld [vmem:[#allocation3 + $0x44] sm:$0xf]
    %v145 = vld [vmem:[#allocation3 + $0x48] sm:$0xff]
    %v146 = vld [vmem:[#allocation3 + $0x50] sm:$0xf]
    %v147 = vld [vmem:[#allocation3 + $0x54] sm:$0xff]
    %v148 = vld [vmem:[#allocation3 + $0x5c] sm:$0xf]
    %v149 = vld [vmem:[#allocation3 + $0x60] sm:$0xff]
    %v150 = vld [vmem:[#allocation3 + $0x68] sm:$0xf]
    %v151 = vld [vmem:[#allocation3 + $0x6c] sm:$0xff]
    %v152 = vld [vmem:[#allocation3 + $0x74] sm:$0xf]
    %v153 = vld [vmem:[#allocation3 + $0x78] sm:$0xff]
    %v154 = vld [vmem:[#allocation3 + $0x80] sm:$0xf]
    %v155 = vld [vmem:[#allocation3 + $0x84] sm:$0xff]
    %v156 = vld [vmem:[#allocation3 + $0x8c] sm:$0xf]
    %v157 = vld [vmem:[#allocation3 + $0x90] sm:$0xff]
    %v158 = vld [vmem:[#allocation3 + $0x98] sm:$0xf]
    %v159 = vld [vmem:[#allocation3 + $0x9c] sm:$0xff]
    %v160 = vld [vmem:[#allocation3 + $0xa4] sm:$0xf]
    %v161 = vld [vmem:[#allocation3 + $0xa8] sm:$0xff]
    %v162 = vld [vmem:[#allocation3 + $0xb0] sm:$0xf]
    %v163 = vld [vmem:[#allocation3 + $0xb4] sm:$0xff]
    %v164 = vld [vmem:[#allocation3 + $0xbc] sm:$0xf]
    %v165 = vld [vmem:[#allocation3 + $0xc0] sm:$0xff]
    %v166 = vld [vmem:[#allocation3 + $0xc8] sm:$0xf]
    %v167 = vld [vmem:[#allocation3 + $0xcc] sm:$0xff]
    %v168 = vld [vmem:[#allocation3 + $0xd4] sm:$0xf]
    %v169 = vld [vmem:[#allocation3 + $0xd8] sm:$0xff]
    %v170 = vld [vmem:[#allocation3 + $0xe0] sm:$0xf]
    %v171 = vld [vmem:[#allocation3 + $0xe4] sm:$0xff]
    %v172 = vld [vmem:[#allocation3 + $0xec] sm:$0xf]
    %v173 = vld [vmem:[#allocation3 + $0xf0] sm:$0xff]
    %v174 = vld [vmem:[#allocation3 + $0xf8] sm:$0xf]
    %v175 = vld [vmem:[#allocation3 + $0xfc] sm:$0xff]
    %v176 = vld [vmem:[#allocation3 + $0x104] sm:$0xf]
    %v177 = vld [vmem:[#allocation3 + $0x108] sm:$0xff]
    %v178 = vld [vmem:[#allocation3 + $0x110] sm:$0xf]
    %v179 = vld [vmem:[#allocation3 + $0x114] sm:$0xff]
    %v180 = vld [vmem:[#allocation3 + $0x11c] sm:$0xf]
    %v181 = vld [vmem:[#allocation3 + $0x120] sm:$0xff]
    %v182 = vld [vmem:[#allocation3 + $0x128] sm:$0xf]
    %v183 = vld [vmem:[#allocation3 + $0x12c] sm:$0xff]
    %v184 = vld [vmem:[#allocation3 + $0x134] sm:$0xf]
    %v185 = vld [vmem:[#allocation3 + $0x138] sm:$0xff]
    %v186 = vld [vmem:[#allocation3 + $0x140] sm:$0xf]
    %v187 = vld [vmem:[#allocation3 + $0x144] sm:$0xff]
    %v188 = vld [vmem:[#allocation3 + $0x14c] sm:$0xf]
    %v189 = vld [vmem:[#allocation3 + $0x150] sm:$0xff]
    %v190 = vld [vmem:[#allocation3 + $0x158] sm:$0xf]
    %v191 = vld [vmem:[#allocation3 + $0x15c] sm:$0xff]
    %v192 = vld [vmem:[#allocation3 + $0x164] sm:$0xf]
    %v193 = vld [vmem:[#allocation3 + $0x168] sm:$0xff]
    %v194 = vld [vmem:[#allocation3 + $0x170] sm:$0xf]
    %v195 = vld [vmem:[#allocation3 + $0x174] sm:$0xff]
    %v196 = vld [vmem:[#allocation3 + $0x17c] sm:$0xf]
    %v197 = vld [vmem:[#allocation3 + $0x180] sm:$0xff]
    %v198 = vld [vmem:[#allocation3 + $0x188] sm:$0xf]
    %v199 = vld [vmem:[#allocation3 + $0x18c] sm:$0xff]
    %v200 = vld [vmem:[#allocation3 + $0x194] sm:$0xf]
    %v201 = vld [vmem:[#allocation3 + $0x198] sm:$0xff]
    %v202 = vld [vmem:[#allocation3 + $0x1a0] sm:$0xf]
    %v203 = vld [vmem:[#allocation3 + $0x1a4] sm:$0xff]
    %v204 = vld [vmem:[#allocation3 + $0x1ac] sm:$0xf]
    %v205 = vld [vmem:[#allocation3 + $0x1b0] sm:$0xff]
    %v206 = vld [vmem:[#allocation3 + $0x1b8] sm:$0xf]
    %v207 = vld [vmem:[#allocation3 + $0x1bc] sm:$0xff]
    %v208 = vld [vmem:[#allocation3 + $0x1c4] sm:$0xf]
    %v209 = vld [vmem:[#allocation3 + $0x1c8] sm:$0xff]
    %v210 = vld [vmem:[#allocation3 + $0x1d0] sm:$0xf]
    %v211 = vld [vmem:[#allocation3 + $0x1d4] sm:$0xff]
    %v212 = vld [vmem:[#allocation3 + $0x1dc] sm:$0xf]
    %v213 = vld [vmem:[#allocation3 + $0x1e0] sm:$0xff]
    %v214 = vld [vmem:[#allocation3 + $0x1e8] sm:$0xf]
    %v215 = vld [vmem:[#allocation3 + $0x1ec] sm:$0xff]
    %v216 = vld [vmem:[#allocation3 + $0x1f4] sm:$0xf]
    %v217 = vld [vmem:[#allocation3 + $0x1f8] sm:$0xff]
    %v218 = vld [vmem:[#allocation3 + $0x200] sm:$0xf]
    %v219 = vld [vmem:[#allocation3 + $0x204] sm:$0xff]
    %v220 = vld [vmem:[#allocation3 + $0x20c] sm:$0xf]
    %v221 = vld [vmem:[#allocation3 + $0x210] sm:$0xff]
    %v222 = vld [vmem:[#allocation3 + $0x218] sm:$0xf]
    %v223 = vld [vmem:[#allocation3 + $0x21c] sm:$0xff]
    %v224 = vld [vmem:[#allocation3 + $0x224] sm:$0xf]
    %v225 = vld [vmem:[#allocation3 + $0x228] sm:$0xff]
    %v226 = vld [vmem:[#allocation3 + $0x230] sm:$0xf]
    %v227 = vld [vmem:[#allocation3 + $0x234] sm:$0xff]
    %v228 = vld [vmem:[#allocation3 + $0x23c] sm:$0xf]
    %v229 = vld [vmem:[#allocation3 + $0x240] sm:$0xff]
    %v230 = vld [vmem:[#allocation3 + $0x248] sm:$0xf]
    %v231 = vld [vmem:[#allocation3 + $0x24c] sm:$0xff]
    %v232 = vld [vmem:[#allocation3 + $0x254] sm:$0xf]
    %v233 = vld [vmem:[#allocation3 + $0x258] sm:$0xff]
    %v234 = vld [vmem:[#allocation3 + $0x260] sm:$0xf]
    %v235 = vld [vmem:[#allocation3 + $0x264] sm:$0xff]
    %v236 = vld [vmem:[#allocation3 + $0x26c] sm:$0xf]
    %v237 = vld [vmem:[#allocation3 + $0x270] sm:$0xff]
    %v238 = vld [vmem:[#allocation3 + $0x278] sm:$0xf]
    %v239 = vld [vmem:[#allocation3 + $0x27c] sm:$0xff]
    %v240 = vld [vmem:[#allocation3 + $0x284] sm:$0xf]
    %v241 = vld [vmem:[#allocation3 + $0x288] sm:$0xff]
    %v242 = vld [vmem:[#allocation3 + $0x290] sm:$0xf]
    %v243 = vld [vmem:[#allocation3 + $0x294] sm:$0xff]
    %v244 = vld [vmem:[#allocation3 + $0x29c] sm:$0xf]
    %v245 = vld [vmem:[#allocation3 + $0x2a0] sm:$0xff]
    %v246 = vld [vmem:[#allocation3 + $0x2a8] sm:$0xf]
    %v247 = vld [vmem:[#allocation3 + $0x2ac] sm:$0xff]
    %v248 = vld [vmem:[#allocation3 + $0x2b4] sm:$0xf]
    %v249 = vld [vmem:[#allocation3 + $0x2b8] sm:$0xff]
    %v250 = vld [vmem:[#allocation3 + $0x2c0] sm:$0xf]
    %v251 = vld [vmem:[#allocation3 + $0x2c4] sm:$0xff]
    %v252 = vld [vmem:[#allocation3 + $0x2cc] sm:$0xf]
    %v253 = vld [vmem:[#allocation3 + $0x2d0] sm:$0xff]
    %v254 = vld [vmem:[#allocation3 + $0x2d8] sm:$0xf]
    %v255 = vld [vmem:[#allocation3 + $0x2dc] sm:$0xff]
    %v256 = vld [vmem:[#allocation3 + $0x2e4] sm:$0xf]
    %v257 = vld [vmem:[#allocation3 + $0x2e8] sm:$0xff]
    %v258 = vld [vmem:[#allocation3 + $0x2f0] sm:$0xf]
    %v259 = vld [vmem:[#allocation3 + $0x2f4] sm:$0xff]
    %v260 = vld [vmem:[#allocation3 + $0x2fc] sm:$0xf]
    %v261 = vld [vmem:[%s2] sm:$0x7]
    %v263 = vperm.slane %v261, 0
    %v264 = vperm.slane %v261, 1
    %v265 = vperm.slane %v261, 2
    %v271 = vunpack.c.l.b16 %v131
    %v272 = vunpack.c.h.b16 %v131
    %v273 = vunpack.c.l.b16 %v132
    %v274 = vunpack.c.h.b16 %v132
    %v275 = vpack.c.b16 %v271, %v271
    %v276 = vpack.c.b16 %v272, %v272
    %v277 = vpack.c.b16 %v273, %v273
    %v278 = vpack.c.b16 %v274, %v274
    %v411 = vunpack.c.l.b16 %v133
    %v412 = vunpack.c.h.b16 %v133
    %v413 = vunpack.c.l.b16 %v134
    %v414 = vunpack.c.l.b16 %v135
    %v415 = vunpack.c.h.b16 %v135
    %v416 = vunpack.c.l.b16 %v136
    %v417 = vunpack.c.l.b16 %v137
    %v418 = vunpack.c.h.b16 %v137
    %v419 = vunpack.c.l.b16 %v138
    %v420 = vunpack.c.l.b16 %v139
    %v421 = vunpack.c.h.b16 %v139
    %v422 = vunpack.c.l.b16 %v140
    %v423 = vunpack.c.l.b16 %v141
    %v424 = vunpack.c.h.b16 %v141
    %v425 = vunpack.c.l.b16 %v142
    %v426 = vunpack.c.l.b16 %v143
    %v427 = vunpack.c.h.b16 %v143
    %v428 = vunpack.c.l.b16 %v144
    %v429 = vunpack.c.l.b16 %v145
    %v430 = vunpack.c.h.b16 %v145
    %v431 = vunpack.c.l.b16 %v146
    %v432 = vunpack.c.l.b16 %v147
    %v433 = vunpack.c.h.b16 %v147
    %v434 = vunpack.c.l.b16 %v148
    %v435 = vunpack.c.l.b16 %v149
    %v436 = vunpack.c.h.b16 %v149
    %v437 = vunpack.c.l.b16 %v150
    %v438 = vunpack.c.l.b16 %v151
    %v439 = vunpack.c.h.b16 %v151
    %v440 = vunpack.c.l.b16 %v152
    %v441 = vunpack.c.l.b16 %v153
    %v442 = vunpack.c.h.b16 %v153
    %v443 = vunpack.c.l.b16 %v154
    %v444 = vunpack.c.l.b16 %v155
    %v445 = vunpack.c.h.b16 %v155
    %v446 = vunpack.c.l.b16 %v156
    %v447 = vunpack.c.l.b16 %v157
    %v448 = vunpack.c.h.b16 %v157
    %v449 = vunpack.c.l.b16 %v158
    %v450 = vunpack.c.l.b16 %v159
    %v451 = vunpack.c.h.b16 %v159
    %v452 = vunpack.c.l.b16 %v160
    %v453 = vunpack.c.l.b16 %v161
    %v454 = vunpack.c.h.b16 %v161
    %v455 = vunpack.c.l.b16 %v162
    %v456 = vunpack.c.l.b16 %v163
    %v457 = vunpack.c.h.b16 %v163
    %v458 = vunpack.c.l.b16 %v164
    %v459 = vunpack.c.l.b16 %v165
    %v460 = vunpack.c.h.b16 %v165
    %v461 = vunpack.c.l.b16 %v166
    %v462 = vunpack.c.l.b16 %v167
    %v463 = vunpack.c.h.b16 %v167
    %v464 = vunpack.c.l.b16 %v168
    %v465 = vunpack.c.l.b16 %v169
    %v466 = vunpack.c.h.b16 %v169
    %v467 = vunpack.c.l.b16 %v170
    %v468 = vunpack.c.l.b16 %v171
    %v469 = vunpack.c.h.b16 %v171
    %v470 = vunpack.c.l.b16 %v172
    %v471 = vunpack.c.l.b16 %v173
    %v472 = vunpack.c.h.b16 %v173
    %v473 = vunpack.c.l.b16 %v174
    %v474 = vunpack.c.l.b16 %v175
    %v475 = vunpack.c.h.b16 %v175
    %v476 = vunpack.c.l.b16 %v176
    %v477 = vunpack.c.l.b16 %v177
    %v478 = vunpack.c.h.b16 %v177
    %v479 = vunpack.c.l.b16 %v178
    %v480 = vunpack.c.l.b16 %v179
    %v481 = vunpack.c.h.b16 %v179
    %v482 = vunpack.c.l.b16 %v180
    %v483 = vunpack.c.l.b16 %v181
    %v484 = vunpack.c.h.b16 %v181
    %v485 = vunpack.c.l.b16 %v182
    %v486 = vunpack.c.l.b16 %v183
    %v487 = vunpack.c.h.b16 %v183
    %v488 = vunpack.c.l.b16 %v184
    %v489 = vunpack.c.l.b16 %v185
    %v490 = vunpack.c.h.b16 %v185
    %v491 = vunpack.c.l.b16 %v186
    %v492 = vunpack.c.l.b16 %v187
    %v493 = vunpack.c.h.b16 %v187
    %v494 = vunpack.c.l.b16 %v188
    %v495 = vunpack.c.l.b16 %v189
    %v496 = vunpack.c.h.b16 %v189
    %v497 = vunpack.c.l.b16 %v190
    %v498 = vunpack.c.l.b16 %v191
    %v499 = vunpack.c.h.b16 %v191
    %v500 = vunpack.c.l.b16 %v192
    %v501 = vunpack.c.l.b16 %v193
    %v502 = vunpack.c.h.b16 %v193
    %v503 = vunpack.c.l.b16 %v194
    %v504 = vunpack.c.l.b16 %v195
    %v505 = vunpack.c.h.b16 %v195
    %v506 = vunpack.c.l.b16 %v196
    %v507 = vunpack.c.l.b16 %v197
    %v508 = vunpack.c.h.b16 %v197
    %v509 = vunpack.c.l.b16 %v198
    %v510 = vunpack.c.l.b16 %v199
    %v511 = vunpack.c.h.b16 %v199
    %v512 = vunpack.c.l.b16 %v200
    %v513 = vunpack.c.l.b16 %v201
    %v514 = vunpack.c.h.b16 %v201
    %v515 = vunpack.c.l.b16 %v202
    %v516 = vunpack.c.l.b16 %v203
    %v517 = vunpack.c.h.b16 %v203
    %v518 = vunpack.c.l.b16 %v204
    %v519 = vunpack.c.l.b16 %v205
    %v520 = vunpack.c.h.b16 %v205
    %v521 = vunpack.c.l.b16 %v206
    %v522 = vunpack.c.l.b16 %v207
    %v523 = vunpack.c.h.b16 %v207
    %v524 = vunpack.c.l.b16 %v208
    %v525 = vunpack.c.l.b16 %v209
    %v526 = vunpack.c.h.b16 %v209
    %v527 = vunpack.c.l.b16 %v210
    %v528 = vunpack.c.l.b16 %v211
    %v529 = vunpack.c.h.b16 %v211
    %v530 = vunpack.c.l.b16 %v212
    %v531 = vunpack.c.l.b16 %v213
    %v532 = vunpack.c.h.b16 %v213
    %v533 = vunpack.c.l.b16 %v214
    %v534 = vunpack.c.l.b16 %v215
    %v535 = vunpack.c.h.b16 %v215
    %v536 = vunpack.c.l.b16 %v216
    %v537 = vunpack.c.l.b16 %v217
    %v538 = vunpack.c.h.b16 %v217
    %v539 = vunpack.c.l.b16 %v218
    %v540 = vunpack.c.l.b16 %v219
    %v541 = vunpack.c.h.b16 %v219
    %v542 = vunpack.c.l.b16 %v220
    %v543 = vunpack.c.l.b16 %v221
    %v544 = vunpack.c.h.b16 %v221
    %v545 = vunpack.c.l.b16 %v222
    %v546 = vunpack.c.l.b16 %v223
    %v547 = vunpack.c.h.b16 %v223
    %v548 = vunpack.c.l.b16 %v224
    %v549 = vunpack.c.l.b16 %v225
    %v550 = vunpack.c.h.b16 %v225
    %v551 = vunpack.c.l.b16 %v226
    %v552 = vunpack.c.l.b16 %v227
    %v553 = vunpack.c.h.b16 %v227
    %v554 = vunpack.c.l.b16 %v228
    %v555 = vunpack.c.l.b16 %v229
    %v556 = vunpack.c.h.b16 %v229
    %v557 = vunpack.c.l.b16 %v230
    %v558 = vunpack.c.l.b16 %v231
    %v559 = vunpack.c.h.b16 %v231
    %v560 = vunpack.c.l.b16 %v232
    %v561 = vunpack.c.l.b16 %v233
    %v562 = vunpack.c.h.b16 %v233
    %v563 = vunpack.c.l.b16 %v234
    %v564 = vunpack.c.l.b16 %v235
    %v565 = vunpack.c.h.b16 %v235
    %v566 = vunpack.c.l.b16 %v236
    %v567 = vunpack.c.l.b16 %v237
    %v568 = vunpack.c.h.b16 %v237
    %v569 = vunpack.c.l.b16 %v238
    %v570 = vunpack.c.l.b16 %v239
    %v571 = vunpack.c.h.b16 %v239
    %v572 = vunpack.c.l.b16 %v240
    %v573 = vunpack.c.l.b16 %v241
    %v574 = vunpack.c.h.b16 %v241
    %v575 = vunpack.c.l.b16 %v242
    %v576 = vunpack.c.l.b16 %v243
    %v577 = vunpack.c.h.b16 %v243
    %v578 = vunpack.c.l.b16 %v244
    %v579 = vunpack.c.l.b16 %v245
    %v580 = vunpack.c.h.b16 %v245
    %v581 = vunpack.c.l.b16 %v246
    %v582 = vunpack.c.l.b16 %v247
    %v583 = vunpack.c.h.b16 %v247
    %v584 = vunpack.c.l.b16 %v248
    %v585 = vunpack.c.l.b16 %v249
    %v586 = vunpack.c.h.b16 %v249
    %v587 = vunpack.c.l.b16 %v250
    %v588 = vunpack.c.l.b16 %v251
    %v589 = vunpack.c.h.b16 %v251
    %v590 = vunpack.c.l.b16 %v252
    %v591 = vunpack.c.l.b16 %v253
    %v592 = vunpack.c.h.b16 %v253
    %v593 = vunpack.c.l.b16 %v254
    %v594 = vunpack.c.l.b16 %v255
    %v595 = vunpack.c.h.b16 %v255
    %v596 = vunpack.c.l.b16 %v256
    %v597 = vunpack.c.l.b16 %v257
    %v598 = vunpack.c.h.b16 %v257
    %v599 = vunpack.c.l.b16 %v258
    %v600 = vunpack.c.l.b16 %v259
    %v601 = vunpack.c.h.b16 %v259
    %v602 = vunpack.c.l.b16 %v260
    %v603 = vpack.c.b16 %v414, %v411
    %v604 = vpack.c.b16 %v415, %v412
    %v605 = vpack.c.b16 %v416, %v413
    %v606 = vpack.c.b16 %v420, %v417
    %v607 = vpack.c.b16 %v421, %v418
    %v608 = vpack.c.b16 %v422, %v419
    %v609 = vpack.c.b16 %v426, %v423
    %v610 = vpack.c.b16 %v427, %v424
    %v611 = vpack.c.b16 %v428, %v425
    %v612 = vpack.c.b16 %v432, %v429
    %v613 = vpack.c.b16 %v433, %v430
    %v614 = vpack.c.b16 %v434, %v431
    %v615 = vpack.c.b16 %v438, %v435
    %v616 = vpack.c.b16 %v439, %v436
    %v617 = vpack.c.b16 %v440, %v437
    %v618 = vpack.c.b16 %v444, %v441
    %v619 = vpack.c.b16 %v445, %v442
    %v620 = vpack.c.b16 %v446, %v443
    %v621 = vpack.c.b16 %v450, %v447
    %v622 = vpack.c.b16 %v451, %v448
    %v623 = vpack.c.b16 %v452, %v449
    %v624 = vpack.c.b16 %v456, %v453
    %v625 = vpack.c.b16 %v457, %v454
    %v626 = vpack.c.b16 %v458, %v455
    %v627 = vpack.c.b16 %v462, %v459
    %v628 = vpack.c.b16 %v463, %v460
    %v629 = vpack.c.b16 %v464, %v461
    %v630 = vpack.c.b16 %v468, %v465
    %v631 = vpack.c.b16 %v469, %v466
    %v632 = vpack.c.b16 %v470, %v467
    %v633 = vpack.c.b16 %v474, %v471
    %v634 = vpack.c.b16 %v475, %v472
    %v635 = vpack.c.b16 %v476, %v473
    %v636 = vpack.c.b16 %v480, %v477
    %v637 = vpack.c.b16 %v481, %v478
    %v638 = vpack.c.b16 %v482, %v479
    %v639 = vpack.c.b16 %v486, %v483
    %v640 = vpack.c.b16 %v487, %v484
    %v641 = vpack.c.b16 %v488, %v485
    %v642 = vpack.c.b16 %v492, %v489
    %v643 = vpack.c.b16 %v493, %v490
    %v644 = vpack.c.b16 %v494, %v491
    %v645 = vpack.c.b16 %v498, %v495
    %v646 = vpack.c.b16 %v499, %v496
    %v647 = vpack.c.b16 %v500, %v497
    %v648 = vpack.c.b16 %v504, %v501
    %v649 = vpack.c.b16 %v505, %v502
    %v650 = vpack.c.b16 %v506, %v503
    %v651 = vpack.c.b16 %v510, %v507
    %v652 = vpack.c.b16 %v511, %v508
    %v653 = vpack.c.b16 %v512, %v509
    %v654 = vpack.c.b16 %v516, %v513
    %v655 = vpack.c.b16 %v517, %v514
    %v656 = vpack.c.b16 %v518, %v515
    %v657 = vpack.c.b16 %v522, %v519
    %v658 = vpack.c.b16 %v523, %v520
    %v659 = vpack.c.b16 %v524, %v521
    %v660 = vpack.c.b16 %v528, %v525
    %v661 = vpack.c.b16 %v529, %v526
    %v662 = vpack.c.b16 %v530, %v527
    %v663 = vpack.c.b16 %v534, %v531
    %v664 = vpack.c.b16 %v535, %v532
    %v665 = vpack.c.b16 %v536, %v533
    %v666 = vpack.c.b16 %v540, %v537
    %v667 = vpack.c.b16 %v541, %v538
    %v668 = vpack.c.b16 %v542, %v539
    %v669 = vpack.c.b16 %v546, %v543
    %v670 = vpack.c.b16 %v547, %v544
    %v671 = vpack.c.b16 %v548, %v545
    %v672 = vpack.c.b16 %v552, %v549
    %v673 = vpack.c.b16 %v553, %v550
    %v674 = vpack.c.b16 %v554, %v551
    %v675 = vpack.c.b16 %v558, %v555
    %v676 = vpack.c.b16 %v559, %v556
    %v677 = vpack.c.b16 %v560, %v557
    %v678 = vpack.c.b16 %v564, %v561
    %v679 = vpack.c.b16 %v565, %v562
    %v680 = vpack.c.b16 %v566, %v563
    %v681 = vpack.c.b16 %v570, %v567
    %v682 = vpack.c.b16 %v571, %v568
    %v683 = vpack.c.b16 %v572, %v569
    %v684 = vpack.c.b16 %v576, %v573
    %v685 = vpack.c.b16 %v577, %v574
    %v686 = vpack.c.b16 %v578, %v575
    %v687 = vpack.c.b16 %v582, %v579
    %v688 = vpack.c.b16 %v583, %v580
    %v689 = vpack.c.b16 %v584, %v581
    %v690 = vpack.c.b16 %v588, %v585
    %v691 = vpack.c.b16 %v589, %v586
    %v692 = vpack.c.b16 %v590, %v587
    %v693 = vpack.c.b16 %v594, %v591
    %v694 = vpack.c.b16 %v595, %v592
    %v695 = vpack.c.b16 %v596, %v593
    %v696 = vpack.c.b16 %v600, %v597
    %v697 = vpack.c.b16 %v601, %v598
    %v698 = vpack.c.b16 %v602, %v599
    %795 = vmatpush.bf16.msra.mxu0 %v624
    %796 = vmatpush.bf16.msra.mxu0 %v621
    %797 = vmatpush.bf16.msra.mxu0 %v618
    %798 = vmatpush.bf16.msra.mxu0 %v615
    %799 = vmatpush.bf16.msra.mxu0 %v612
    %800 = vmatpush.bf16.msra.mxu0 %v609
    %801 = vmatpush.bf16.msra.mxu0 %v606
    %802 = vmatpush.bf16.msra.mxu0 %v603
    %803 = vmatmul.bf16.gmra.mxu0 %v275
    %v804 = vpop.f32.mrf.mxu0
    %v805 = vadd.f32 %v263, %v804
    %v806 = vpop.f32.mrf.mxu0
    %807 = vdwg.mxu0
    %808 = vmatpush.bf16.msra.mxu0 %v648
    %809 = vmatpush.bf16.msra.mxu0 %v645
    %810 = vmatpush.bf16.msra.mxu0 %v642
    %811 = vmatpush.bf16.msra.mxu0 %v639
    %812 = vmatpush.bf16.msra.mxu0 %v636
    %813 = vmatpush.bf16.msra.mxu0 %v633
    %814 = vmatpush.bf16.msra.mxu0 %v630
    %815 = vmatpush.bf16.msra.mxu0 %v627
    %816 = vmatmul.bf16.gmra.mxu0 %v276
    %v817 = vpop.f32.mrf.mxu0
    %v818 = vadd.f32 %v805, %v817
    %v819 = vpop.f32.mrf.mxu0
    %820 = vdwg.mxu0
    %821 = vmatpush.bf16.msra.mxu0 %v672
    %822 = vmatpush.bf16.msra.mxu0 %v669
    %823 = vmatpush.bf16.msra.mxu0 %v666
    %824 = vmatpush.bf16.msra.mxu0 %v663
    %825 = vmatpush.bf16.msra.mxu0 %v660
    %826 = vmatpush.bf16.msra.mxu0 %v657
    %827 = vmatpush.bf16.msra.mxu0 %v654
    %828 = vmatpush.bf16.msra.mxu0 %v651
    %829 = vmatmul.bf16.gmra.mxu0 %v277
    %v830 = vpop.f32.mrf.mxu0
    %v831 = vadd.f32 %v818, %v830
    %v832 = vpop.f32.mrf.mxu0
    %833 = vdwg.mxu0
    %834 = vmatpush.bf16.msra.mxu0 %v696
    %835 = vmatpush.bf16.msra.mxu0 %v693
    %836 = vmatpush.bf16.msra.mxu0 %v690
    %837 = vmatpush.bf16.msra.mxu0 %v687
    %838 = vmatpush.bf16.msra.mxu0 %v684
    %839 = vmatpush.bf16.msra.mxu0 %v681
    %840 = vmatpush.bf16.msra.mxu0 %v678
    %841 = vmatpush.bf16.msra.mxu0 %v675
    %842 = vmatmul.bf16.gmra.mxu0 %v278
    %v843 = vpop.f32.mrf.mxu0
    %v844 = vadd.f32 %v831, %v843
    %v845 = vpop.f32.mrf.mxu0
    %846 = vdwg.mxu0
    %847 = vmatpush.bf16.msra.mxu0 %v625
    %848 = vmatpush.bf16.msra.mxu0 %v622
    %849 = vmatpush.bf16.msra.mxu0 %v619
    %850 = vmatpush.bf16.msra.mxu0 %v616
    %851 = vmatpush.bf16.msra.mxu0 %v613
    %852 = vmatpush.bf16.msra.mxu0 %v610
    %853 = vmatpush.bf16.msra.mxu0 %v607
    %854 = vmatpush.bf16.msra.mxu0 %v604
    %855 = vmatmul.bf16.gmra.mxu0 %v275
    %v856 = vpop.f32.mrf.mxu0
    %v857 = vadd.f32 %v264, %v856
    %v858 = vpop.f32.mrf.mxu0
    %859 = vdwg.mxu0
    %860 = vmatpush.bf16.msra.mxu0 %v649
    %861 = vmatpush.bf16.msra.mxu0 %v646
    %862 = vmatpush.bf16.msra.mxu0 %v643
    %863 = vmatpush.bf16.msra.mxu0 %v640
    %864 = vmatpush.bf16.msra.mxu0 %v637
    %865 = vmatpush.bf16.msra.mxu0 %v634
    %866 = vmatpush.bf16.msra.mxu0 %v631
    %867 = vmatpush.bf16.msra.mxu0 %v628
    %868 = vmatmul.bf16.gmra.mxu0 %v276
    %v869 = vpop.f32.mrf.mxu0
    %v870 = vadd.f32 %v857, %v869
    %v871 = vpop.f32.mrf.mxu0
    %872 = vdwg.mxu0
    %873 = vmatpush.bf16.msra.mxu0 %v673
    %874 = vmatpush.bf16.msra.mxu0 %v670
    %875 = vmatpush.bf16.msra.mxu0 %v667
    %876 = vmatpush.bf16.msra.mxu0 %v664
    %877 = vmatpush.bf16.msra.mxu0 %v661
    %878 = vmatpush.bf16.msra.mxu0 %v658
    %879 = vmatpush.bf16.msra.mxu0 %v655
    %880 = vmatpush.bf16.msra.mxu0 %v652
    %881 = vmatmul.bf16.gmra.mxu0 %v277
    %v882 = vpop.f32.mrf.mxu0
    %v883 = vadd.f32 %v870, %v882
    %v884 = vpop.f32.mrf.mxu0
    %885 = vdwg.mxu0
    %886 = vmatpush.bf16.msra.mxu0 %v697
    %887 = vmatpush.bf16.msra.mxu0 %v694
    %888 = vmatpush.bf16.msra.mxu0 %v691
    %889 = vmatpush.bf16.msra.mxu0 %v688
    %890 = vmatpush.bf16.msra.mxu0 %v685
    %891 = vmatpush.bf16.msra.mxu0 %v682
    %892 = vmatpush.bf16.msra.mxu0 %v679
    %893 = vmatpush.bf16.msra.mxu0 %v676
    %894 = vmatmul.bf16.gmra.mxu0 %v278
    %v895 = vpop.f32.mrf.mxu0
    %v896 = vadd.f32 %v883, %v895
    %v897 = vpop.f32.mrf.mxu0
    %898 = vdwg.mxu0
    %899 = vmatpush.bf16.msra.mxu0 %v626
    %900 = vmatpush.bf16.msra.mxu0 %v623
    %901 = vmatpush.bf16.msra.mxu0 %v620
    %902 = vmatpush.bf16.msra.mxu0 %v617
    %903 = vmatpush.bf16.msra.mxu0 %v614
    %904 = vmatpush.bf16.msra.mxu0 %v611
    %905 = vmatpush.bf16.msra.mxu0 %v608
    %906 = vmatpush.bf16.msra.mxu0 %v605
    %907 = vmatmul.bf16.gmra.mxu0 %v275
    %v908 = vpop.f32.mrf.mxu0
    %v909 = vadd.f32 %v265, %v908
    %v910 = vpop.f32.mrf.mxu0
    %911 = vdwg.mxu0
    %912 = vmatpush.bf16.msra.mxu0 %v650
    %913 = vmatpush.bf16.msra.mxu0 %v647
    %914 = vmatpush.bf16.msra.mxu0 %v644
    %915 = vmatpush.bf16.msra.mxu0 %v641
    %916 = vmatpush.bf16.msra.mxu0 %v638
    %917 = vmatpush.bf16.msra.mxu0 %v635
    %918 = vmatpush.bf16.msra.mxu0 %v632
    %919 = vmatpush.bf16.msra.mxu0 %v629
    %920 = vmatmul.bf16.gmra.mxu0 %v276
    %v921 = vpop.f32.mrf.mxu0
    %v922 = vadd.f32 %v909, %v921
    %v923 = vpop.f32.mrf.mxu0
    %924 = vdwg.mxu0
    %925 = vmatpush.bf16.msra.mxu0 %v674
    %926 = vmatpush.bf16.msra.mxu0 %v671
    %927 = vmatpush.bf16.msra.mxu0 %v668
    %928 = vmatpush.bf16.msra.mxu0 %v665
    %929 = vmatpush.bf16.msra.mxu0 %v662
    %930 = vmatpush.bf16.msra.mxu0 %v659
    %931 = vmatpush.bf16.msra.mxu0 %v656
    %932 = vmatpush.bf16.msra.mxu0 %v653
    %933 = vmatmul.bf16.gmra.mxu0 %v277
    %v934 = vpop.f32.mrf.mxu0
    %v935 = vadd.f32 %v922, %v934
    %v936 = vpop.f32.mrf.mxu0
    %937 = vdwg.mxu0
    %938 = vmatpush.bf16.msra.mxu0 %v698
    %939 = vmatpush.bf16.msra.mxu0 %v695
    %940 = vmatpush.bf16.msra.mxu0 %v692
    %941 = vmatpush.bf16.msra.mxu0 %v689
    %942 = vmatpush.bf16.msra.mxu0 %v686
    %943 = vmatpush.bf16.msra.mxu0 %v683
    %944 = vmatpush.bf16.msra.mxu0 %v680
    %945 = vmatpush.bf16.msra.mxu0 %v677
    %946 = vmatmul.bf16.gmra.mxu0 %v278
    %v947 = vpop.f32.mrf.mxu0
    %v948 = vadd.f32 %v935, %v947
    %v949 = vpop.f32.mrf.mxu0
    %950 = vdwg.mxu0
    %v951 = vmax.f32 %v844, 0.0
    %v952 = vmax.f32 %v896, 0.0
    %v953 = vmax.f32 %v948, 0.0
    %v954 = vpack.c.bf16 %v951, %v951
    %v955 = vpack.c.bf16 %v952, %v952
    %v956 = vpack.c.bf16 %v953, %v953
    %v957 = vld [vmem:[#allocation6] sm:$0xff]
    %v958 = vld [vmem:[#allocation6 + $0x8] sm:$0xff]
    %v959 = vld [vmem:[#allocation6 + $0x10] sm:$0xff]
    %v960 = vld [vmem:[#allocation6 + $0x18] sm:$0xff]
    %v961 = vld [vmem:[#allocation6 + $0x20] sm:$0xff]
    %v962 = vld [vmem:[#allocation6 + $0x28] sm:$0xff]
    %v963 = vld [vmem:[#allocation6 + $0x30] sm:$0xff]
    %v964 = vld [vmem:[#allocation6 + $0x38] sm:$0xff]
    %v965 = vld [vmem:[#allocation6 + $0x40] sm:$0xff]
    %v966 = vld [vmem:[#allocation6 + $0x48] sm:$0xff]
    %v967 = vld [vmem:[#allocation6 + $0x50] sm:$0xff]
    %v968 = vld [vmem:[#allocation6 + $0x58] sm:$0xff]
    %v969 = vld [vmem:[#allocation6 + $0x60] sm:$0xff]
    %v970 = vld [vmem:[#allocation6 + $0x68] sm:$0xff]
    %v971 = vld [vmem:[#allocation6 + $0x70] sm:$0xff]
    %v972 = vld [vmem:[#allocation6 + $0x78] sm:$0xff]
    %v973 = vld [vmem:[#allocation6 + $0x80] sm:$0xff]
    %v974 = vld [vmem:[#allocation6 + $0x88] sm:$0xff]
    %v975 = vld [vmem:[#allocation6 + $0x90] sm:$0xff]
    %v976 = vld [vmem:[#allocation6 + $0x98] sm:$0xff]
    %v977 = vld [vmem:[#allocation6 + $0xa0] sm:$0xff]
    %v978 = vld [vmem:[#allocation6 + $0xa8] sm:$0xff]
    %v979 = vld [vmem:[#allocation6 + $0xb0] sm:$0xff]
    %v980 = vld [vmem:[#allocation6 + $0xb8] sm:$0xff]
    %v981 = vld [vmem:[#allocation6 + $0xc0] sm:$0xff]
    %v982 = vld [vmem:[#allocation6 + $0xc8] sm:$0xff]
    %v983 = vld [vmem:[#allocation6 + $0xd0] sm:$0xff]
    %v984 = vld [vmem:[#allocation6 + $0xd8] sm:$0xff]
    %v985 = vld [vmem:[#allocation6 + $0xe0] sm:$0xff]
    %v986 = vld [vmem:[#allocation6 + $0xe8] sm:$0xff]
    %v987 = vld [vmem:[#allocation6 + $0xf0] sm:$0xff]
    %v988 = vld [vmem:[#allocation6 + $0xf8] sm:$0xff]
    %v989 = vld [vmem:[#allocation6 + $0x100] sm:$0xff]
    %v990 = vld [vmem:[#allocation6 + $0x108] sm:$0xff]
    %v991 = vld [vmem:[#allocation6 + $0x110] sm:$0xff]
    %v992 = vld [vmem:[#allocation6 + $0x118] sm:$0xff]
    %v993 = vld [vmem:[#allocation6 + $0x120] sm:$0xff]
    %v994 = vld [vmem:[#allocation6 + $0x128] sm:$0xff]
    %v995 = vld [vmem:[#allocation6 + $0x130] sm:$0xff]
    %v996 = vld [vmem:[#allocation6 + $0x138] sm:$0xff]
    %v997 = vld [vmem:[#allocation6 + $0x140] sm:$0xff]
    %v998 = vld [vmem:[#allocation6 + $0x148] sm:$0xff]
    %v999 = vld [vmem:[#allocation6 + $0x150] sm:$0xff]
    %v1000 = vld [vmem:[#allocation6 + $0x158] sm:$0xff]
    %v1001 = vld [vmem:[#allocation6 + $0x160] sm:$0xff]
    %v1002 = vld [vmem:[#allocation6 + $0x168] sm:$0xff]
    %v1003 = vld [vmem:[#allocation6 + $0x170] sm:$0xff]
    %v1004 = vld [vmem:[#allocation6 + $0x178] sm:$0xff]
    %v1005 = vld [vmem:[%s4] sm:$0x3]
    %v1007 = vperm.slane %v1005, 0
    %v1008 = vperm.slane %v1005, 1
    %v1059 = vunpack.c.l.b16 %v957
    %v1060 = vunpack.c.h.b16 %v957
    %v1061 = vunpack.c.l.b16 %v958
    %v1062 = vunpack.c.h.b16 %v958
    %v1063 = vunpack.c.l.b16 %v959
    %v1064 = vunpack.c.h.b16 %v959
    %v1065 = vunpack.c.l.b16 %v960
    %v1066 = vunpack.c.h.b16 %v960
    %v1067 = vunpack.c.l.b16 %v961
    %v1068 = vunpack.c.h.b16 %v961
    %v1069 = vunpack.c.l.b16 %v962
    %v1070 = vunpack.c.h.b16 %v962
    %v1071 = vunpack.c.l.b16 %v963
    %v1072 = vunpack.c.h.b16 %v963
    %v1073 = vunpack.c.l.b16 %v964
    %v1074 = vunpack.c.h.b16 %v964
    %v1075 = vunpack.c.l.b16 %v965
    %v1076 = vunpack.c.h.b16 %v965
    %v1077 = vunpack.c.l.b16 %v966
    %v1078 = vunpack.c.h.b16 %v966
    %v1079 = vunpack.c.l.b16 %v967
    %v1080 = vunpack.c.h.b16 %v967
    %v1081 = vunpack.c.l.b16 %v968
    %v1082 = vunpack.c.h.b16 %v968
    %v1083 = vunpack.c.l.b16 %v969
    %v1084 = vunpack.c.h.b16 %v969
    %v1085 = vunpack.c.l.b16 %v970
    %v1086 = vunpack.c.h.b16 %v970
    %v1087 = vunpack.c.l.b16 %v971
    %v1088 = vunpack.c.h.b16 %v971
    %v1089 = vunpack.c.l.b16 %v972
    %v1090 = vunpack.c.h.b16 %v972
    %v1091 = vunpack.c.l.b16 %v973
    %v1092 = vunpack.c.h.b16 %v973
    %v1093 = vunpack.c.l.b16 %v974
    %v1094 = vunpack.c.h.b16 %v974
    %v1095 = vunpack.c.l.b16 %v975
    %v1096 = vunpack.c.h.b16 %v975
    %v1097 = vunpack.c.l.b16 %v976
    %v1098 = vunpack.c.h.b16 %v976
    %v1099 = vunpack.c.l.b16 %v977
    %v1100 = vunpack.c.h.b16 %v977
    %v1101 = vunpack.c.l.b16 %v978
    %v1102 = vunpack.c.h.b16 %v978
    %v1103 = vunpack.c.l.b16 %v979
    %v1104 = vunpack.c.h.b16 %v979
    %v1105 = vunpack.c.l.b16 %v980
    %v1106 = vunpack.c.h.b16 %v980
    %v1107 = vunpack.c.l.b16 %v981
    %v1108 = vunpack.c.h.b16 %v981
    %v1109 = vunpack.c.l.b16 %v982
    %v1110 = vunpack.c.h.b16 %v982
    %v1111 = vunpack.c.l.b16 %v983
    %v1112 = vunpack.c.h.b16 %v983
    %v1113 = vunpack.c.l.b16 %v984
    %v1114 = vunpack.c.h.b16 %v984
    %v1115 = vunpack.c.l.b16 %v985
    %v1116 = vunpack.c.h.b16 %v985
    %v1117 = vunpack.c.l.b16 %v986
    %v1118 = vunpack.c.h.b16 %v986
    %v1119 = vunpack.c.l.b16 %v987
    %v1120 = vunpack.c.h.b16 %v987
    %v1121 = vunpack.c.l.b16 %v988
    %v1122 = vunpack.c.h.b16 %v988
    %v1123 = vunpack.c.l.b16 %v989
    %v1124 = vunpack.c.h.b16 %v989
    %v1125 = vunpack.c.l.b16 %v990
    %v1126 = vunpack.c.h.b16 %v990
    %v1127 = vunpack.c.l.b16 %v991
    %v1128 = vunpack.c.h.b16 %v991
    %v1129 = vunpack.c.l.b16 %v992
    %v1130 = vunpack.c.h.b16 %v992
    %v1131 = vunpack.c.l.b16 %v993
    %v1132 = vunpack.c.h.b16 %v993
    %v1133 = vunpack.c.l.b16 %v994
    %v1134 = vunpack.c.h.b16 %v994
    %v1135 = vunpack.c.l.b16 %v995
    %v1136 = vunpack.c.h.b16 %v995
    %v1137 = vunpack.c.l.b16 %v996
    %v1138 = vunpack.c.h.b16 %v996
    %v1139 = vunpack.c.l.b16 %v997
    %v1140 = vunpack.c.h.b16 %v997
    %v1141 = vunpack.c.l.b16 %v998
    %v1142 = vunpack.c.h.b16 %v998
    %v1143 = vunpack.c.l.b16 %v999
    %v1144 = vunpack.c.h.b16 %v999
    %v1145 = vunpack.c.l.b16 %v1000
    %v1146 = vunpack.c.h.b16 %v1000
    %v1147 = vunpack.c.l.b16 %v1001
    %v1148 = vunpack.c.h.b16 %v1001
    %v1149 = vunpack.c.l.b16 %v1002
    %v1150 = vunpack.c.h.b16 %v1002
    %v1151 = vunpack.c.l.b16 %v1003
    %v1152 = vunpack.c.h.b16 %v1003
    %v1153 = vunpack.c.l.b16 %v1004
    %v1154 = vunpack.c.h.b16 %v1004
    %v1155 = vpack.c.b16 %v1061, %v1059
    %v1156 = vpack.c.b16 %v1062, %v1060
    %v1157 = vpack.c.b16 %v1065, %v1063
    %v1158 = vpack.c.b16 %v1066, %v1064
    %v1159 = vpack.c.b16 %v1069, %v1067
    %v1160 = vpack.c.b16 %v1070, %v1068
    %v1161 = vpack.c.b16 %v1073, %v1071
    %v1162 = vpack.c.b16 %v1074, %v1072
    %v1163 = vpack.c.b16 %v1077, %v1075
    %v1164 = vpack.c.b16 %v1078, %v1076
    %v1165 = vpack.c.b16 %v1081, %v1079
    %v1166 = vpack.c.b16 %v1082, %v1080
    %v1167 = vpack.c.b16 %v1085, %v1083
    %v1168 = vpack.c.b16 %v1086, %v1084
    %v1169 = vpack.c.b16 %v1089, %v1087
    %v1170 = vpack.c.b16 %v1090, %v1088
    %v1171 = vpack.c.b16 %v1093, %v1091
    %v1172 = vpack.c.b16 %v1094, %v1092
    %v1173 = vpack.c.b16 %v1097, %v1095
    %v1174 = vpack.c.b16 %v1098, %v1096
    %v1175 = vpack.c.b16 %v1101, %v1099
    %v1176 = vpack.c.b16 %v1102, %v1100
    %v1177 = vpack.c.b16 %v1105, %v1103
    %v1178 = vpack.c.b16 %v1106, %v1104
    %v1179 = vpack.c.b16 %v1109, %v1107
    %v1180 = vpack.c.b16 %v1110, %v1108
    %v1181 = vpack.c.b16 %v1113, %v1111
    %v1182 = vpack.c.b16 %v1114, %v1112
    %v1183 = vpack.c.b16 %v1117, %v1115
    %v1184 = vpack.c.b16 %v1118, %v1116
    %v1185 = vpack.c.b16 %v1121, %v1119
    %v1186 = vpack.c.b16 %v1122, %v1120
    %v1187 = vpack.c.b16 %v1125, %v1123
    %v1188 = vpack.c.b16 %v1126, %v1124
    %v1189 = vpack.c.b16 %v1129, %v1127
    %v1190 = vpack.c.b16 %v1130, %v1128
    %v1191 = vpack.c.b16 %v1133, %v1131
    %v1192 = vpack.c.b16 %v1134, %v1132
    %v1193 = vpack.c.b16 %v1137, %v1135
    %v1194 = vpack.c.b16 %v1138, %v1136
    %v1195 = vpack.c.b16 %v1141, %v1139
    %v1196 = vpack.c.b16 %v1142, %v1140
    %v1197 = vpack.c.b16 %v1145, %v1143
    %v1198 = vpack.c.b16 %v1146, %v1144
    %v1199 = vpack.c.b16 %v1149, %v1147
    %v1200 = vpack.c.b16 %v1150, %v1148
    %v1201 = vpack.c.b16 %v1153, %v1151
    %v1202 = vpack.c.b16 %v1154, %v1152
    %1251 = vmatpush.bf16.msra.mxu0 %v1169
    %1252 = vmatpush.bf16.msra.mxu0 %v1167
    %1253 = vmatpush.bf16.msra.mxu0 %v1165
    %1254 = vmatpush.bf16.msra.mxu0 %v1163
    %1255 = vmatpush.bf16.msra.mxu0 %v1161
    %1256 = vmatpush.bf16.msra.mxu0 %v1159
    %1257 = vmatpush.bf16.msra.mxu0 %v1157
    %1258 = vmatpush.bf16.msra.mxu0 %v1155
    %1259 = vmatmul.bf16.gmra.mxu0 %v954
    %v1260 = vpop.f32.mrf.mxu0
    %v1261 = vadd.f32 %v1007, %v1260
    %v1262 = vpop.f32.mrf.mxu0
    %1263 = vdwg.mxu0
    %1264 = vmatpush.bf16.msra.mxu0 %v1185
    %1265 = vmatpush.bf16.msra.mxu0 %v1183
    %1266 = vmatpush.bf16.msra.mxu0 %v1181
    %1267 = vmatpush.bf16.msra.mxu0 %v1179
    %1268 = vmatpush.bf16.msra.mxu0 %v1177
    %1269 = vmatpush.bf16.msra.mxu0 %v1175
    %1270 = vmatpush.bf16.msra.mxu0 %v1173
    %1271 = vmatpush.bf16.msra.mxu0 %v1171
    %1272 = vmatmul.bf16.gmra.mxu0 %v955
    %v1273 = vpop.f32.mrf.mxu0
    %v1274 = vadd.f32 %v1261, %v1273
    %v1275 = vpop.f32.mrf.mxu0
    %1276 = vdwg.mxu0
    %1277 = vmatpush.bf16.msra.mxu0 %v1201
    %1278 = vmatpush.bf16.msra.mxu0 %v1199
    %1279 = vmatpush.bf16.msra.mxu0 %v1197
    %1280 = vmatpush.bf16.msra.mxu0 %v1195
    %1281 = vmatpush.bf16.msra.mxu0 %v1193
    %1282 = vmatpush.bf16.msra.mxu0 %v1191
    %1283 = vmatpush.bf16.msra.mxu0 %v1189
    %1284 = vmatpush.bf16.msra.mxu0 %v1187
    %1285 = vmatmul.bf16.gmra.mxu0 %v956
    %v1286 = vpop.f32.mrf.mxu0
    %v1287 = vadd.f32 %v1274, %v1286
    %v1288 = vpop.f32.mrf.mxu0
    %1289 = vdwg.mxu0
    %1290 = vmatpush.bf16.msra.mxu0 %v1170
    %1291 = vmatpush.bf16.msra.mxu0 %v1168
    %1292 = vmatpush.bf16.msra.mxu0 %v1166
    %1293 = vmatpush.bf16.msra.mxu0 %v1164
    %1294 = vmatpush.bf16.msra.mxu0 %v1162
    %1295 = vmatpush.bf16.msra.mxu0 %v1160
    %1296 = vmatpush.bf16.msra.mxu0 %v1158
    %1297 = vmatpush.bf16.msra.mxu0 %v1156
    %1298 = vmatmul.bf16.gmra.mxu0 %v954
    %v1299 = vpop.f32.mrf.mxu0
    %v1300 = vadd.f32 %v1008, %v1299
    %v1301 = vpop.f32.mrf.mxu0
    %1302 = vdwg.mxu0
    %1303 = vmatpush.bf16.msra.mxu0 %v1186
    %1304 = vmatpush.bf16.msra.mxu0 %v1184
    %1305 = vmatpush.bf16.msra.mxu0 %v1182
    %1306 = vmatpush.bf16.msra.mxu0 %v1180
    %1307 = vmatpush.bf16.msra.mxu0 %v1178
    %1308 = vmatpush.bf16.msra.mxu0 %v1176
    %1309 = vmatpush.bf16.msra.mxu0 %v1174
    %1310 = vmatpush.bf16.msra.mxu0 %v1172
    %1311 = vmatmul.bf16.gmra.mxu0 %v955
    %v1312 = vpop.f32.mrf.mxu0
    %v1313 = vadd.f32 %v1300, %v1312
    %v1314 = vpop.f32.mrf.mxu0
    %1315 = vdwg.mxu0
    %1316 = vmatpush.bf16.msra.mxu0 %v1202
    %1317 = vmatpush.bf16.msra.mxu0 %v1200
    %1318 = vmatpush.bf16.msra.mxu0 %v1198
    %1319 = vmatpush.bf16.msra.mxu0 %v1196
    %1320 = vmatpush.bf16.msra.mxu0 %v1194
    %1321 = vmatpush.bf16.msra.mxu0 %v1192
    %1322 = vmatpush.bf16.msra.mxu0 %v1190
    %1323 = vmatpush.bf16.msra.mxu0 %v1188
    %1324 = vmatmul.bf16.gmra.mxu0 %v956
    %v1325 = vpop.f32.mrf.mxu0
    %v1326 = vadd.f32 %v1313, %v1325
    %v1327 = vpop.f32.mrf.mxu0
    %1328 = vdwg.mxu0
    %v1329 = vmax.f32 %v1287, 0.0
    %v1330 = vmax.f32 %v1326, 0.0
    %v1331 = vpack.c.bf16 %v1329, %v1329
    %v1332 = vpack.c.bf16 %v1330, %v1330
    %v1333 = vld [vmem:[#allocation8] sm:$0xf]
    %v1334 = vld [vmem:[#allocation8 + $0x4] sm:$0xf]
    %v1335 = vld [vmem:[#allocation8 + $0x8] sm:$0xf]
    %v1336 = vld [vmem:[#allocation8 + $0xc] sm:$0xf]
    %v1337 = vld [vmem:[#allocation8 + $0x10] sm:$0xf]
    %v1338 = vld [vmem:[#allocation8 + $0x14] sm:$0xf]
    %v1339 = vld [vmem:[#allocation8 + $0x18] sm:$0xf]
    %v1340 = vld [vmem:[#allocation8 + $0x1c] sm:$0xf]
    %v1341 = vld [vmem:[#allocation8 + $0x20] sm:$0xf]
    %v1342 = vld [vmem:[#allocation8 + $0x24] sm:$0xf]
    %v1343 = vld [vmem:[#allocation8 + $0x28] sm:$0xf]
    %v1344 = vld [vmem:[#allocation8 + $0x2c] sm:$0xf]
    %v1345 = vld [vmem:[#allocation8 + $0x30] sm:$0xf]
    %v1346 = vld [vmem:[#allocation8 + $0x34] sm:$0xf]
    %v1347 = vld [vmem:[#allocation8 + $0x38] sm:$0xf]
    %v1348 = vld [vmem:[#allocation8 + $0x3c] sm:$0xf]
    %v1349 = vld [vmem:[#allocation8 + $0x40] sm:$0xf]
    %v1350 = vld [vmem:[#allocation8 + $0x44] sm:$0xf]
    %v1351 = vld [vmem:[#allocation8 + $0x48] sm:$0xf]
    %v1352 = vld [vmem:[#allocation8 + $0x4c] sm:$0xf]
    %v1353 = vld [vmem:[#allocation8 + $0x50] sm:$0xf]
    %v1354 = vld [vmem:[#allocation8 + $0x54] sm:$0xf]
    %v1355 = vld [vmem:[#allocation8 + $0x58] sm:$0xf]
    %v1356 = vld [vmem:[#allocation8 + $0x5c] sm:$0xf]
    %v1357 = vld [vmem:[#allocation8 + $0x60] sm:$0xf]
    %v1358 = vld [vmem:[#allocation8 + $0x64] sm:$0xf]
    %v1359 = vld [vmem:[#allocation8 + $0x68] sm:$0xf]
    %v1360 = vld [vmem:[#allocation8 + $0x6c] sm:$0xf]
    %v1361 = vld [vmem:[#allocation8 + $0x70] sm:$0xf]
    %v1362 = vld [vmem:[#allocation8 + $0x74] sm:$0xf]
    %v1363 = vld [vmem:[#allocation8 + $0x78] sm:$0xf]
    %v1364 = vld [vmem:[#allocation8 + $0x7c] sm:$0xf]
    %v1365 = vld [vmem:[%s6] sm:$0x1]
    %v1367 = vperm.slane %v1365, 0
    %v1401 = vunpack.c.l.b16 %v1333
    %v1402 = vunpack.c.l.b16 %v1334
    %v1403 = vunpack.c.l.b16 %v1335
    %v1404 = vunpack.c.l.b16 %v1336
    %v1405 = vunpack.c.l.b16 %v1337
    %v1406 = vunpack.c.l.b16 %v1338
    %v1407 = vunpack.c.l.b16 %v1339
    %v1408 = vunpack.c.l.b16 %v1340
    %v1409 = vunpack.c.l.b16 %v1341
    %v1410 = vunpack.c.l.b16 %v1342
    %v1411 = vunpack.c.l.b16 %v1343
    %v1412 = vunpack.c.l.b16 %v1344
    %v1413 = vunpack.c.l.b16 %v1345
    %v1414 = vunpack.c.l.b16 %v1346
    %v1415 = vunpack.c.l.b16 %v1347
    %v1416 = vunpack.c.l.b16 %v1348
    %v1417 = vunpack.c.l.b16 %v1349
    %v1418 = vunpack.c.l.b16 %v1350
    %v1419 = vunpack.c.l.b16 %v1351
    %v1420 = vunpack.c.l.b16 %v1352
    %v1421 = vunpack.c.l.b16 %v1353
    %v1422 = vunpack.c.l.b16 %v1354
    %v1423 = vunpack.c.l.b16 %v1355
    %v1424 = vunpack.c.l.b16 %v1356
    %v1425 = vunpack.c.l.b16 %v1357
    %v1426 = vunpack.c.l.b16 %v1358
    %v1427 = vunpack.c.l.b16 %v1359
    %v1428 = vunpack.c.l.b16 %v1360
    %v1429 = vunpack.c.l.b16 %v1361
    %v1430 = vunpack.c.l.b16 %v1362
    %v1431 = vunpack.c.l.b16 %v1363
    %v1432 = vunpack.c.l.b16 %v1364
    %v1433 = vpack.c.b16 %v1402, %v1401
    %v1434 = vpack.c.b16 %v1404, %v1403
    %v1435 = vpack.c.b16 %v1406, %v1405
    %v1436 = vpack.c.b16 %v1408, %v1407
    %v1437 = vpack.c.b16 %v1410, %v1409
    %v1438 = vpack.c.b16 %v1412, %v1411
    %v1439 = vpack.c.b16 %v1414, %v1413
    %v1440 = vpack.c.b16 %v1416, %v1415
    %v1441 = vpack.c.b16 %v1418, %v1417
    %v1442 = vpack.c.b16 %v1420, %v1419
    %v1443 = vpack.c.b16 %v1422, %v1421
    %v1444 = vpack.c.b16 %v1424, %v1423
    %v1445 = vpack.c.b16 %v1426, %v1425
    %v1446 = vpack.c.b16 %v1428, %v1427
    %v1447 = vpack.c.b16 %v1430, %v1429
    %v1448 = vpack.c.b16 %v1432, %v1431
    %1465 = vmatpush.bf16.msra.mxu0 %v1440
    %1466 = vmatpush.bf16.msra.mxu0 %v1439
    %1467 = vmatpush.bf16.msra.mxu0 %v1438
    %1468 = vmatpush.bf16.msra.mxu0 %v1437
    %1469 = vmatpush.bf16.msra.mxu0 %v1436
    %1470 = vmatpush.bf16.msra.mxu0 %v1435
    %1471 = vmatpush.bf16.msra.mxu0 %v1434
    %1472 = vmatpush.bf16.msra.mxu0 %v1433
    %1473 = vmatmul.bf16.gmra.mxu0 %v1331
    %v1474 = vpop.f32.mrf.mxu0
    %v1475 = vadd.f32 %v1367, %v1474
    %v1476 = vpop.f32.mrf.mxu0
    %1477 = vdwg.mxu0
    %1478 = vmatpush.bf16.msra.mxu0 %v1448
    %1479 = vmatpush.bf16.msra.mxu0 %v1447
    %1480 = vmatpush.bf16.msra.mxu0 %v1446
    %1481 = vmatpush.bf16.msra.mxu0 %v1445
    %1482 = vmatpush.bf16.msra.mxu0 %v1444
    %1483 = vmatpush.bf16.msra.mxu0 %v1443
    %1484 = vmatpush.bf16.msra.mxu0 %v1442
    %1485 = vmatpush.bf16.msra.mxu0 %v1441
    %1486 = vmatmul.bf16.gmra.mxu0 %v1332
    %v1487 = vpop.f32.mrf.mxu0
    %v1488 = vadd.f32 %v1475, %v1487
    %v1489 = vpop.f32.mrf.mxu0
    %1490 = vdwg.mxu0
    %v1491 = vmax.f32 %v1488, 0.0
    %v1492 = vpack.c.bf16 %v1491, %v1491
    %v1493 = vld [vmem:[%s7] sm:$0xf]
    %v1494 = vld [vmem:[%s7 + $0x4] sm:$0xf]
    %v1495 = vld [vmem:[%s7 + $0x8] sm:$0xf]
    %v1496 = vld [vmem:[%s7 + $0xc] sm:$0xf]
    %v1497 = vld [vmem:[%s7 + $0x10] sm:$0xf]
    %v1498 = vld [vmem:[%s7 + $0x14] sm:$0xf]
    %v1499 = vld [vmem:[%s7 + $0x18] sm:$0xf]
    %v1500 = vld [vmem:[%s7 + $0x1c] sm:$0xf]
    %v1501 = vld [vmem:[%s7 + $0x20] sm:$0xf]
    %v1502 = vld [vmem:[%s7 + $0x24] sm:$0xf]
    %v1503 = vld [vmem:[%s7 + $0x28] sm:$0xf]
    %v1504 = vld [vmem:[%s7 + $0x2c] sm:$0xf]
    %v1505 = vld [vmem:[%s7 + $0x30] sm:$0xf]
    %v1506 = vld [vmem:[%s7 + $0x34] sm:$0xf]
    %v1507 = vld [vmem:[%s7 + $0x38] sm:$0xf]
    %v1508 = vld [vmem:[%s7 + $0x3c] sm:$0xf]
    %v1509 = vld [vmem:[%s8] sm:$0x1]
    %v1511 = vperm.slane %v1509, 0
    %v1529 = vunpack.c.l.b16 %v1493
    %v1530 = vunpack.c.l.b16 %v1494
    %v1531 = vunpack.c.l.b16 %v1495
    %v1532 = vunpack.c.l.b16 %v1496
    %v1533 = vunpack.c.l.b16 %v1497
    %v1534 = vunpack.c.l.b16 %v1498
    %v1535 = vunpack.c.l.b16 %v1499
    %v1536 = vunpack.c.l.b16 %v1500
    %v1537 = vunpack.c.l.b16 %v1501
    %v1538 = vunpack.c.l.b16 %v1502
    %v1539 = vunpack.c.l.b16 %v1503
    %v1540 = vunpack.c.l.b16 %v1504
    %v1541 = vunpack.c.l.b16 %v1505
    %v1542 = vunpack.c.l.b16 %v1506
    %v1543 = vunpack.c.l.b16 %v1507
    %v1544 = vunpack.c.l.b16 %v1508
    %v1545 = vpack.c.b16 %v1530, %v1529
    %v1546 = vpack.c.b16 %v1532, %v1531
    %v1547 = vpack.c.b16 %v1534, %v1533
    %v1548 = vpack.c.b16 %v1536, %v1535
    %v1549 = vpack.c.b16 %v1538, %v1537
    %v1550 = vpack.c.b16 %v1540, %v1539
    %v1551 = vpack.c.b16 %v1542, %v1541
    %v1552 = vpack.c.b16 %v1544, %v1543
    %1561 = vmatpush.bf16.msra.mxu0 %v1552
    %1562 = vmatpush.bf16.msra.mxu0 %v1551
    %1563 = vmatpush.bf16.msra.mxu0 %v1550
    %1564 = vmatpush.bf16.msra.mxu0 %v1549
    %1565 = vmatpush.bf16.msra.mxu0 %v1548
    %1566 = vmatpush.bf16.msra.mxu0 %v1547
    %1567 = vmatpush.bf16.msra.mxu0 %v1546
    %1568 = vmatpush.bf16.msra.mxu0 %v1545
    %1569 = vmatmul.bf16.gmra.mxu0 %v1492
    %v1570 = vpop.f32.mrf.mxu0
    %v1571 = vadd.f32 %v1511, %v1570
    %v1572 = vpop.f32.mrf.mxu0
    %1573 = vdwg.mxu0
    %v1574 = vmax.f32 %v1571, 0.0
    %v1575 = vmin.f32 %v1574, 6.0
    %v1576 = vpack.c.bf16 %v1575, %v1575
    %v1577 = vld [vmem:[#allocation9] sm:$0xf]
    %v1578 = vld [vmem:[#allocation9 + $0x4] sm:$0xf]
    %v1579 = vld [vmem:[#allocation9 + $0x8] sm:$0xf]
    %v1580 = vld [vmem:[#allocation9 + $0xc] sm:$0xf]
    %v1581 = vld [vmem:[#allocation9 + $0x10] sm:$0xf]
    %v1582 = vld [vmem:[#allocation9 + $0x14] sm:$0xf]
    %v1583 = vld [vmem:[#allocation9 + $0x18] sm:$0xf]
    %v1584 = vld [vmem:[#allocation9 + $0x1c] sm:$0xf]
    %v1585 = vld [vmem:[#allocation9 + $0x20] sm:$0xf]
    %v1586 = vld [vmem:[#allocation9 + $0x24] sm:$0xf]
    %v1587 = vld [vmem:[#allocation9 + $0x28] sm:$0xf]
    %v1588 = vld [vmem:[#allocation9 + $0x2c] sm:$0xf]
    %v1589 = vld [vmem:[#allocation9 + $0x30] sm:$0xf]
    %v1590 = vld [vmem:[#allocation9 + $0x34] sm:$0xf]
    %v1591 = vld [vmem:[#allocation9 + $0x38] sm:$0xf]
    %v1592 = vld [vmem:[#allocation9 + $0x3c] sm:$0xf]
    %v1593 = vld [vmem:[%s10] sm:$0x1]
    %v1595 = vperm.slane %v1593, 0
    %v1613 = vunpack.c.l.b16 %v1577
    %v1614 = vunpack.c.l.b16 %v1578
    %v1615 = vunpack.c.l.b16 %v1579
    %v1616 = vunpack.c.l.b16 %v1580
    %v1617 = vunpack.c.l.b16 %v1581
    %v1618 = vunpack.c.l.b16 %v1582
    %v1619 = vunpack.c.l.b16 %v1583
    %v1620 = vunpack.c.l.b16 %v1584
    %v1621 = vunpack.c.l.b16 %v1585
    %v1622 = vunpack.c.l.b16 %v1586
    %v1623 = vunpack.c.l.b16 %v1587
    %v1624 = vunpack.c.l.b16 %v1588
    %v1625 = vunpack.c.l.b16 %v1589
    %v1626 = vunpack.c.l.b16 %v1590
    %v1627 = vunpack.c.l.b16 %v1591
    %v1628 = vunpack.c.l.b16 %v1592
    %v1629 = vpack.c.b16 %v1614, %v1613
    %v1630 = vpack.c.b16 %v1616, %v1615
    %v1631 = vpack.c.b16 %v1618, %v1617
    %v1632 = vpack.c.b16 %v1620, %v1619
    %v1633 = vpack.c.b16 %v1622, %v1621
    %v1634 = vpack.c.b16 %v1624, %v1623
    %v1635 = vpack.c.b16 %v1626, %v1625
    %v1636 = vpack.c.b16 %v1628, %v1627
    %1645 = vmatpush.bf16.msra.mxu0 %v1636
    %1646 = vmatpush.bf16.msra.mxu0 %v1635
    %1647 = vmatpush.bf16.msra.mxu0 %v1634
    %1648 = vmatpush.bf16.msra.mxu0 %v1633
    %1649 = vmatpush.bf16.msra.mxu0 %v1632
    %1650 = vmatpush.bf16.msra.mxu0 %v1631
    %1651 = vmatpush.bf16.msra.mxu0 %v1630
    %1652 = vmatpush.bf16.msra.mxu0 %v1629
    %1653 = vmatmul.bf16.gmra.mxu0 %v1576
    %v1654 = vpop.f32.mrf.mxu0
    %v1655 = vadd.f32 %v1595, %v1654
    %v1656 = vpop.f32.mrf.mxu0
    %1657 = vdwg.mxu0
    %v1658 = vmax.f32 %v1655, 0.0
    %v1659 = vmin.f32 %v1658, 6.0
    %v1660 = vpack.c.bf16 %v1659, %v1659
    %v1661 = vld [vmem:[#allocation11] sm:$0xf]
    %v1662 = vld [vmem:[#allocation11 + $0x4] sm:$0xf]
    %v1663 = vld [vmem:[#allocation11 + $0x8] sm:$0xf]
    %v1664 = vld [vmem:[#allocation11 + $0xc] sm:$0xf]
    %v1665 = vld [vmem:[#allocation11 + $0x10] sm:$0xf]
    %v1666 = vld [vmem:[#allocation11 + $0x14] sm:$0xf]
    %v1667 = vld [vmem:[#allocation11 + $0x18] sm:$0xf]
    %v1668 = vld [vmem:[#allocation11 + $0x1c] sm:$0xf]
    %v1669 = vld [vmem:[#allocation11 + $0x20] sm:$0xf]
    %v1670 = vld [vmem:[#allocation11 + $0x24] sm:$0xf]
    %v1671 = vld [vmem:[#allocation11 + $0x28] sm:$0xf]
    %v1672 = vld [vmem:[#allocation11 + $0x2c] sm:$0xf]
    %v1673 = vld [vmem:[#allocation11 + $0x30] sm:$0xf]
    %v1674 = vld [vmem:[#allocation11 + $0x34] sm:$0xf]
    %v1675 = vld [vmem:[#allocation11 + $0x38] sm:$0xf]
    %v1676 = vld [vmem:[#allocation11 + $0x3c] sm:$0xf]
    %v1677 = vld [vmem:[%s12] sm:$0x1]
    %v1679 = vperm.slane %v1677, 0
    %v1697 = vunpack.c.l.b16 %v1661
    %v1698 = vunpack.c.l.b16 %v1662
    %v1699 = vunpack.c.l.b16 %v1663
    %v1700 = vunpack.c.l.b16 %v1664
    %v1701 = vunpack.c.l.b16 %v1665
    %v1702 = vunpack.c.l.b16 %v1666
    %v1703 = vunpack.c.l.b16 %v1667
    %v1704 = vunpack.c.l.b16 %v1668
    %v1705 = vunpack.c.l.b16 %v1669
    %v1706 = vunpack.c.l.b16 %v1670
    %v1707 = vunpack.c.l.b16 %v1671
    %v1708 = vunpack.c.l.b16 %v1672
    %v1709 = vunpack.c.l.b16 %v1673
    %v1710 = vunpack.c.l.b16 %v1674
    %v1711 = vunpack.c.l.b16 %v1675
    %v1712 = vunpack.c.l.b16 %v1676
    %v1713 = vpack.c.b16 %v1698, %v1697
    %v1714 = vpack.c.b16 %v1700, %v1699
    %v1715 = vpack.c.b16 %v1702, %v1701
    %v1716 = vpack.c.b16 %v1704, %v1703
    %v1717 = vpack.c.b16 %v1706, %v1705
    %v1718 = vpack.c.b16 %v1708, %v1707
    %v1719 = vpack.c.b16 %v1710, %v1709
    %v1720 = vpack.c.b16 %v1712, %v1711
    %1729 = vmatpush.bf16.msra.mxu0 %v1720
    %1730 = vmatpush.bf16.msra.mxu0 %v1719
    %1731 = vmatpush.bf16.msra.mxu0 %v1718
    %1732 = vmatpush.bf16.msra.mxu0 %v1717
    %1733 = vmatpush.bf16.msra.mxu0 %v1716
    %1734 = vmatpush.bf16.msra.mxu0 %v1715
    %1735 = vmatpush.bf16.msra.mxu0 %v1714
    %1736 = vmatpush.bf16.msra.mxu0 %v1713
    %1737 = vmatmul.bf16.gmra.mxu0 %v1660
    %v1738 = vpop.f32.mrf.mxu0
    %v1739 = vadd.f32 %v1679, %v1738
    %v1740 = vpop.f32.mrf.mxu0
    %1741 = vdwg.mxu0
    %v1742 = vmax.f32 %v1739, 0.0
    %v1743 = vmin.f32 %v1742, 6.0
    %v1744 = vpack.c.bf16 %v1743, %v1743
    %v1745 = vld [vmem:[%s13] sm:$0xf]
    %1746 = vmatpush.bf16.xpose.msra.mxu0 0
    %1747 = vmatpush.bf16.xpose.msra.mxu0 0
    %1748 = vmatpush.bf16.xpose.msra.mxu0 0
    %1749 = vmatpush.bf16.xpose.msra.mxu0 0
    %1750 = vmatpush.bf16.xpose.msra.mxu0 0
    %1751 = vmatpush.bf16.xpose.msra.mxu0 0
    %1752 = vmatpush.bf16.xpose.msra.mxu0 0
    %1753 = vmatpush.bf16.xpose.msra.mxu0 %v1744
    %1754 = vmatmul.bf16.gmra.mxu0 %v1745
    %v1755 = vpop.f32.mrf.mxu0
    %v1756 = vadd.f32 0.0, %v1755
    %v1757 = vpop.f32.mrf.mxu0
    %1758 = vdwg.mxu0
    %s1759 = sld [smem:[#allocation2]]
    %v1760 = vstv %s1759
    %v1761 = vadd.f32 %v1756, %v1760
    %v1762 = vxor.u32 %v1761, 2147483648
    %v1763 = vmul.f32 %v1762, 1.442695
    %v1764 = vpow.pop %v1763
    %v1765 = vadd.f32 %v1764, 1.0
    %v1766 = vrcp.pop %v1765
    %v1767 = vmul.f32 %v1765, %v1766
    %v1768 = vsub.f32 1.0, %v1767
    %v1769 = vmul.f32 %v1766, %v1768
    %v1770 = vadd.f32 %v1766, %v1769
    %vm1771 = vweird.f32 %v1765
    %vm1772 = vweird.f32 %v1766
    %vm1773 = vmor %vm1771, %vm1772
    %v1774 = vsel %vm1773, %v1766, %v1770
    %v1775 = vand.u32 2147483647, %v1765
    %vm1776 = vcmp.eq.f32.partialorder %v1775, 8.507059e+37
    %v1777 = vand.u32 %v1765, 2147483648
    %v1778 = vor.u32 1.1754944e-38, %v1777
    %v1779 = vsel %vm1776, %v1778, %v1774
    %v1780 = vmul.f32 1.0, %v1779
    %vm1781 = vcmask 57344
    %1782 = vst.msk [vmem:[#allocation12] sm:$0x1] %vm1781, %v1780
    // Predicated region
    $region82: #{adnetwork_forward.1} parent=1 // pred_check
      _
    $region83: #{adnetwork_forward.1} parent=1 // pred_check_branch
      %1784 = sbr.rel (0) target = $region85
    $region84: #{adnetwork_forward.1} parent=1 // pred_region
      %1786 = vsyncadd [#allocation5], 0
      %s1788 = sshll.u32 [#allocation12], 4
      %s1789 = int_to_ptr.vmem [resolvable:$true] %s1788
      %s1790 = sshll.u32 %s15, 4
      %s1791 = int_to_ptr.hbm [resolvable:$true] %s1790
      %1793 = dma.vmem_to_hbm [thread:$0]  %s1789, 16, %s1791, [#allocation5]
    $region85: #{adnetwork_forward.1} parent=1 // pred_fallthru
      _
    // Predicated region
    $region86: #{adnetwork_forward.1} parent=1 // pred_check
      _
    $region87: #{adnetwork_forward.1} parent=1 // pred_check_branch
      %1795 = sbr.rel (0) target = $region89
    $region88: #{adnetwork_forward.1} parent=1 // pred_region
      %1797 = dma.done [#allocation5], 16
    $region89: #{adnetwork_forward.1} parent=1 // pred_fallthru
      _
    %1798 = vsyncpa [#allocation4], 1
    %1799 = vsyncpa [#allocation7], 1
    %1800 = vsyncpa [#allocation10], 1
    %1801 = vsyncpa [#allocation5], 1

</llo_original>
